<compile_context>
chip_gen: v5e
topology: v5e:2x2
jax: 0.10.0
libtpu: 0.0.40
codegen_flags: <defaults>
</compile_context>

<pallas_src>
import jax
import jax.numpy as jnp
from jax.experimental import pallas as pl
from jax.experimental.pallas import tpu as pltpu


def _round_up(n, m):
    return ((n + m - 1) // m) * m


def _pick_batch_tile(batch):
    """Batch tile: whole batch for small B; 256-multiple (<=512) for large B."""
    if batch <= 256:
        return _round_up(batch, 8)          # single tile, full batch
    if batch < 1024:
        return 256                           # 2..4 tiles -> megacore sharding on v7x
    return 512                               # >= 2 tiles, fully fills 256-wide MXU


def _mlp_kernel(x_ref, w1_ref, b1_ref, w2_ref, b2_ref,
                w3_ref, b3_ref, w4_ref, b4_ref, out_ref):
    """One batch tile of the full MLP chain.

    x is f32 (TM, 768), cast to bf16 in-kernel; weights are bf16; biases f32;
    every dot accumulates in f32 on the MXU; activations are re-cast to bf16
    between layers; the padded logits are stored as bf16.
    """
    x = x_ref[...].astype(jnp.bfloat16)

    # feature_layers: Linear(768->512) + ReLU   (Dropout = identity at inference)
    h = jnp.dot(x, w1_ref[...], preferred_element_type=jnp.float32) + b1_ref[...]
    h = jnp.maximum(h, 0.0).astype(jnp.bfloat16)

    # feature_layers: Linear(512->256) + ReLU
    h = jnp.dot(h, w2_ref[...], preferred_element_type=jnp.float32) + b2_ref[...]
    h = jnp.maximum(h, 0.0).astype(jnp.bfloat16)

    # classifier: Linear(256->128) + ReLU      (Dropout = identity at inference)
    h = jnp.dot(h, w3_ref[...], preferred_element_type=jnp.float32) + b3_ref[...]
    h = jnp.maximum(h, 0.0).astype(jnp.bfloat16)

    # classifier: Linear(128->num_classes), zero-padded to a lane-dense width
    logits = jnp.dot(h, w4_ref[...], preferred_element_type=jnp.float32) + b4_ref[...]
    out_ref[...] = logits.astype(out_ref.dtype)


def prepare_params(params, num_classes=2):
    """One-time parameter prep: bf16 weight casts + lane-dense last-layer pad."""
    w1, b1, w2, b2, w3, b3, w4, b4 = params
    out_pad = max(128, _round_up(num_classes, 128))
    w1 = w1.astype(jnp.bfloat16)
    w2 = w2.astype(jnp.bfloat16)
    w3 = w3.astype(jnp.bfloat16)
    w4p = jnp.zeros((w4.shape[0], out_pad), dtype=jnp.bfloat16)
    w4p = w4p.at[:, :num_classes].set(w4.astype(jnp.bfloat16))
    b4p = jnp.zeros((1, out_pad), dtype=jnp.float32).at[:, :num_classes].set(b4)
    return (w1, b1.astype(jnp.float32),
            w2, b2.astype(jnp.float32),
            w3, b3.astype(jnp.float32),
            w4p, b4p), out_pad


def forgery_detection_forward(x, prepared, num_classes=2, with_segmentation=True):
    """JAX wrapper reproducing ForgeryDetectionNetAlternative.forward."""
    params, out_pad = prepared
    w1, b1, w2, b2, w3, b3, w4p, b4p = params

    B, feature_dim = x.shape
    x = x.astype(jnp.float32)

    tm = _pick_batch_tile(B)
    b_pad = _round_up(B, tm)
    if b_pad != B:
        x = jnp.pad(x, ((0, b_pad - B), (0, 0)))
    num_tiles = b_pad // tm

    # Pinned (DMA'd once, single-buffered) weight/bias specs.
    def _pinned(shape):
        return pl.BlockSpec(shape, lambda i: (0, 0), pipeline_mode=pl.Buffered(1))

    logits_padded = pl.pallas_call(
        _mlp_kernel,
        out_shape=jax.ShapeDtypeStruct((b_pad, out_pad), jnp.bfloat16),
        grid=(num_tiles,),
        in_specs=[
            pl.BlockSpec((tm, feature_dim), lambda i: (i, 0)),   # x tile (f32)
            _pinned(w1.shape), _pinned(b1.shape),
            _pinned(w2.shape), _pinned(b2.shape),
            _pinned(w3.shape), _pinned(b3.shape),
            _pinned(w4p.shape), _pinned(b4p.shape),
        ],
        out_specs=pl.BlockSpec((tm, out_pad), lambda i: (i, 0)),
        compiler_params=pltpu.CompilerParams(
            dimension_semantics=("parallel",)),
    )(x, w1, b1, w2, b2, w3, b3, w4p, b4p)

    classification = logits_padded[:B, :num_classes].astype(jnp.float32)

    # The module's forward always returns these zero maps; they are cheap
    # constant fills produced outside the kernel.
    attention_maps = [jnp.zeros((B, 1, 16, 16), dtype=jnp.float32)]
    if with_segmentation:
        segmentation = jnp.zeros((B, 1, 32, 32), dtype=jnp.float32)
        return classification, segmentation, attention_maps
    return classification, attention_maps


def init_params(key, feature_dim=768, num_classes=2):
    """Deterministic kaiming_normal_(mode='fan_out', relu) init; zero biases.

    Weights are stored transposed, shape (in_features, out_features), f32.
    """
    dims = [(feature_dim, 512), (512, 256), (256, 128), (128, num_classes)]
    params = []
    keys = jax.random.split(key, len(dims))
    for (fan_in, fan_out), k in zip(dims, keys):
        std = (2.0 / fan_out) ** 0.5  # fan_out mode, relu gain
        w = jax.random.normal(k, (fan_in, fan_out), dtype=jnp.float32) * std
        b = jnp.zeros((1, fan_out), dtype=jnp.float32)
        params.extend([w, b])
    return tuple(params)


if __name__ == "__main__":
    key = jax.random.PRNGKey(0)
    k_x, k_p = jax.random.split(key)

    B, FEATURE_DIM, NUM_CLASSES = 8, 768, 2
    x = jax.random.normal(k_x, (B, FEATURE_DIM), dtype=jnp.float32)
    params = init_params(k_p, feature_dim=FEATURE_DIM, num_classes=NUM_CLASSES)
    prepared = prepare_params(params, num_classes=NUM_CLASSES)

    classification, segmentation, attention_maps = forgery_detection_forward(
        x, prepared, num_classes=NUM_CLASSES, with_segmentation=True)

    jax.block_until_ready(classification)
    jax.block_until_ready(segmentation)
    jax.block_until_ready(attention_maps[0])

    # Sanity: compare against a plain-JAX reference using the same precision
    # recipe (bf16 operands, f32 accumulation, bf16 final store).
    w1, b1, w2, b2, w3, b3, w4, b4 = params
    xb = x.astype(jnp.bfloat16)
    h = jnp.maximum(
        jnp.dot(xb, w1.astype(jnp.bfloat16),
                preferred_element_type=jnp.float32) + b1, 0.0).astype(jnp.bfloat16)
    h = jnp.maximum(
        jnp.dot(h, w2.astype(jnp.bfloat16),
                preferred_element_type=jnp.float32) + b2, 0.0).astype(jnp.bfloat16)
    h = jnp.maximum(
        jnp.dot(h, w3.astype(jnp.bfloat16),
                preferred_element_type=jnp.float32) + b3, 0.0).astype(jnp.bfloat16)
    ref = (jnp.dot(h, w4.astype(jnp.bfloat16),
                   preferred_element_type=jnp.float32) + b4)
    ref = ref.astype(jnp.bfloat16).astype(jnp.float32)

    assert classification.shape == (B, NUM_CLASSES)
    assert segmentation.shape == (B, 1, 32, 32)
    assert attention_maps[0].shape == (B, 1, 16, 16)
    assert jnp.allclose(classification, ref, atol=2e-2, rtol=2e-2), (
        classification, ref)

    print("KERNEL_OK")
</pallas_src>

<mosaic_0001>
module attributes {stable_mosaic.version = 11 : i64} {
  func.func @_mlp_kernel(%arg0: i32, %arg1: memref<8x768xf32, #tpu.memory_space<vmem>>, %arg2: memref<768x512xbf16, #tpu.memory_space<vmem>>, %arg3: memref<1x512xf32, #tpu.memory_space<vmem>>, %arg4: memref<512x256xbf16, #tpu.memory_space<vmem>>, %arg5: memref<1x256xf32, #tpu.memory_space<vmem>>, %arg6: memref<256x128xbf16, #tpu.memory_space<vmem>>, %arg7: memref<1x128xf32, #tpu.memory_space<vmem>>, %arg8: memref<128x128xbf16, #tpu.memory_space<vmem>>, %arg9: memref<1x128xf32, #tpu.memory_space<vmem>>, %arg10: memref<8x128xbf16, #tpu.memory_space<vmem>>) attributes {dimension_semantics = [#tpu.dimension_semantics<parallel>], iteration_bounds = array<i64: 1>, scalar_prefetch = 0 : i64, scratch_operands = 0 : i64, tpu.core_type = #tpu.core_type<tc>, window_params = [{transform_indices = @transform_0, window_bounds = array<i64: 8, 768>}, {pipeline_mode = #tpu.pipeline_mode<synchronous>, transform_indices = @transform_1, window_bounds = array<i64: 768, 512>}, {pipeline_mode = #tpu.pipeline_mode<synchronous>, transform_indices = @transform_2, window_bounds = array<i64: 1, 512>}, {pipeline_mode = #tpu.pipeline_mode<synchronous>, transform_indices = @transform_3, window_bounds = array<i64: 512, 256>}, {pipeline_mode = #tpu.pipeline_mode<synchronous>, transform_indices = @transform_4, window_bounds = array<i64: 1, 256>}, {pipeline_mode = #tpu.pipeline_mode<synchronous>, transform_indices = @transform_5, window_bounds = array<i64: 256, 128>}, {pipeline_mode = #tpu.pipeline_mode<synchronous>, transform_indices = @transform_6, window_bounds = array<i64: 1, 128>}, {pipeline_mode = #tpu.pipeline_mode<synchronous>, transform_indices = @transform_7, window_bounds = array<i64: 128, 128>}, {pipeline_mode = #tpu.pipeline_mode<synchronous>, transform_indices = @transform_8, window_bounds = array<i64: 1, 128>}, {transform_indices = @transform_9, window_bounds = array<i64: 8, 128>}]} {
    %c0 = arith.constant 0 : index
    %c0_0 = arith.constant 0 : index
    %0 = vector.load %arg1[%c0, %c0_0] : memref<8x768xf32, #tpu.memory_space<vmem>>, vector<8x768xf32>
    %1 = arith.truncf %0 : vector<8x768xf32> to vector<8x768xbf16>
    %c0_1 = arith.constant 0 : index
    %c0_2 = arith.constant 0 : index
    %2 = vector.load %arg2[%c0_1, %c0_2] : memref<768x512xbf16, #tpu.memory_space<vmem>>, vector<768x512xbf16>
    %cst = arith.constant dense<0.000000e+00> : vector<8x512xf32>
    %3 = tpu.matmul %1, %2, %cst {dimension_numbers = #tpu.dot_dimension_numbers<[1], [0], [0], [1], [0, 0, 1, 1], [], []>} : vector<8x768xbf16>, vector<768x512xbf16>, vector<8x512xf32> -> vector<8x512xf32>
    %c0_3 = arith.constant 0 : index
    %c0_4 = arith.constant 0 : index
    %4 = vector.load %arg3[%c0_3, %c0_4] : memref<1x512xf32, #tpu.memory_space<vmem>>, vector<1x512xf32>
    %5 = vector.broadcast %4 : vector<1x512xf32> to vector<8x512xf32>
    %6 = arith.addf %3, %5 : vector<8x512xf32>
    %cst_5 = arith.constant 0.000000e+00 : f32
    %7 = vector.broadcast %cst_5 : f32 to vector<8x512xf32>
    %8 = arith.maximumf %6, %7 : vector<8x512xf32>
    %9 = arith.truncf %8 : vector<8x512xf32> to vector<8x512xbf16>
    %c0_6 = arith.constant 0 : index
    %c0_7 = arith.constant 0 : index
    %10 = vector.load %arg4[%c0_6, %c0_7] : memref<512x256xbf16, #tpu.memory_space<vmem>>, vector<512x256xbf16>
    %cst_8 = arith.constant dense<0.000000e+00> : vector<8x256xf32>
    %11 = tpu.matmul %9, %10, %cst_8 {dimension_numbers = #tpu.dot_dimension_numbers<[1], [0], [0], [1], [0, 0, 1, 1], [], []>} : vector<8x512xbf16>, vector<512x256xbf16>, vector<8x256xf32> -> vector<8x256xf32>
    %c0_9 = arith.constant 0 : index
    %c0_10 = arith.constant 0 : index
    %12 = vector.load %arg5[%c0_9, %c0_10] : memref<1x256xf32, #tpu.memory_space<vmem>>, vector<1x256xf32>
    %13 = vector.broadcast %12 : vector<1x256xf32> to vector<8x256xf32>
    %14 = arith.addf %11, %13 : vector<8x256xf32>
    %cst_11 = arith.constant 0.000000e+00 : f32
    %15 = vector.broadcast %cst_11 : f32 to vector<8x256xf32>
    %16 = arith.maximumf %14, %15 : vector<8x256xf32>
    %17 = arith.truncf %16 : vector<8x256xf32> to vector<8x256xbf16>
    %c0_12 = arith.constant 0 : index
    %c0_13 = arith.constant 0 : index
    %18 = vector.load %arg6[%c0_12, %c0_13] : memref<256x128xbf16, #tpu.memory_space<vmem>>, vector<256x128xbf16>
    %cst_14 = arith.constant dense<0.000000e+00> : vector<8x128xf32>
    %19 = tpu.matmul %17, %18, %cst_14 {dimension_numbers = #tpu.dot_dimension_numbers<[1], [0], [0], [1], [0, 0, 1, 1], [], []>} : vector<8x256xbf16>, vector<256x128xbf16>, vector<8x128xf32> -> vector<8x128xf32>
    %c0_15 = arith.constant 0 : index
    %c0_16 = arith.constant 0 : index
    %20 = vector.load %arg7[%c0_15, %c0_16] : memref<1x128xf32, #tpu.memory_space<vmem>>, vector<1x128xf32>
    %21 = vector.broadcast %20 : vector<1x128xf32> to vector<8x128xf32>
    %22 = arith.addf %19, %21 : vector<8x128xf32>
    %cst_17 = arith.constant 0.000000e+00 : f32
    %23 = vector.broadcast %cst_17 : f32 to vector<8x128xf32>
    %24 = arith.maximumf %22, %23 : vector<8x128xf32>
    %25 = arith.truncf %24 : vector<8x128xf32> to vector<8x128xbf16>
    %c0_18 = arith.constant 0 : index
    %c0_19 = arith.constant 0 : index
    %26 = vector.load %arg8[%c0_18, %c0_19] : memref<128x128xbf16, #tpu.memory_space<vmem>>, vector<128x128xbf16>
    %cst_20 = arith.constant dense<0.000000e+00> : vector<8x128xf32>
    %27 = tpu.matmul %25, %26, %cst_20 {dimension_numbers = #tpu.dot_dimension_numbers<[1], [0], [0], [1], [0, 0, 1, 1], [], []>} : vector<8x128xbf16>, vector<128x128xbf16>, vector<8x128xf32> -> vector<8x128xf32>
    %c0_21 = arith.constant 0 : index
    %c0_22 = arith.constant 0 : index
    %28 = vector.load %arg9[%c0_21, %c0_22] : memref<1x128xf32, #tpu.memory_space<vmem>>, vector<1x128xf32>
    %29 = vector.broadcast %28 : vector<1x128xf32> to vector<8x128xf32>
    %30 = arith.addf %27, %29 : vector<8x128xf32>
    %31 = arith.truncf %30 : vector<8x128xf32> to vector<8x128xbf16>
    %c0_23 = arith.constant 0 : index
    %c0_24 = arith.constant 0 : index
    %32 = vector.load %arg10[%c0_23, %c0_24] : memref<8x128xbf16, #tpu.memory_space<vmem>>, vector<8x128xbf16>
    tpu.vector_store %arg10[%c0_23, %c0_24], %31 {strides = array<i32>} : memref<8x128xbf16, #tpu.memory_space<vmem>>, vector<8x128xbf16>,
    return
  }
  func.func @transform_0(%arg0: i32) -> (i32, i32) {
    %c0_i32 = arith.constant 0 : i32
    %c0_i32_0 = arith.constant 0 : i32
    return %arg0, %c0_i32 : i32, i32
  }
  func.func @transform_1(%arg0: i32) -> (i32, i32) {
    %c0_i32 = arith.constant 0 : i32
    %c0_i32_0 = arith.constant 0 : i32
    %c0_i32_1 = arith.constant 0 : i32
    return %c0_i32, %c0_i32_0 : i32, i32
  }
  func.func @transform_2(%arg0: i32) -> (i32, i32) {
    %c0_i32 = arith.constant 0 : i32
    %c0_i32_0 = arith.constant 0 : i32
    %c0_i32_1 = arith.constant 0 : i32
    return %c0_i32, %c0_i32_0 : i32, i32
  }
  func.func @transform_3(%arg0: i32) -> (i32, i32) {
    %c0_i32 = arith.constant 0 : i32
    %c0_i32_0 = arith.constant 0 : i32
    %c0_i32_1 = arith.constant 0 : i32
    return %c0_i32, %c0_i32_0 : i32, i32
  }
  func.func @transform_4(%arg0: i32) -> (i32, i32) {
    %c0_i32 = arith.constant 0 : i32
    %c0_i32_0 = arith.constant 0 : i32
    %c0_i32_1 = arith.constant 0 : i32
    return %c0_i32, %c0_i32_0 : i32, i32
  }
  func.func @transform_5(%arg0: i32) -> (i32, i32) {
    %c0_i32 = arith.constant 0 : i32
    %c0_i32_0 = arith.constant 0 : i32
    %c0_i32_1 = arith.constant 0 : i32
    return %c0_i32, %c0_i32_0 : i32, i32
  }
  func.func @transform_6(%arg0: i32) -> (i32, i32) {
    %c0_i32 = arith.constant 0 : i32
    %c0_i32_0 = arith.constant 0 : i32
    %c0_i32_1 = arith.constant 0 : i32
    return %c0_i32, %c0_i32_0 : i32, i32
  }
  func.func @transform_7(%arg0: i32) -> (i32, i32) {
    %c0_i32 = arith.constant 0 : i32
    %c0_i32_0 = arith.constant 0 : i32
    %c0_i32_1 = arith.constant 0 : i32
    return %c0_i32, %c0_i32_0 : i32, i32
  }
  func.func @transform_8(%arg0: i32) -> (i32, i32) {
    %c0_i32 = arith.constant 0 : i32
    %c0_i32_0 = arith.constant 0 : i32
    %c0_i32_1 = arith.constant 0 : i32
    return %c0_i32, %c0_i32_0 : i32, i32
  }
  func.func @transform_9(%arg0: i32) -> (i32, i32) {
    %c0_i32 = arith.constant 0 : i32
    %c0_i32_0 = arith.constant 0 : i32
    return %arg0, %c0_i32 : i32, i32
  }
}

</mosaic_0001>

<llo_original>
// kernel: tpu_custom_call.1
$region0: #{tpu_custom_call.1}
  #allocation0 [shape = 'u32[]', space=smem, size = 0x4, offset = 0x4, fixed_abs, tag = 'smem constant byte address 0x4 - core index']
  #allocation1 [shape = 'u32[72,128]{1,0:T(1,128)}', space=vmem, size = 0x9000, scoped, tag = 'internal scratch']
  %s0 = inlined_call_operand.hbm [shape: f32[8,768], index: 0, kind: input, shape index: {}]
  %s1 = inlined_call_operand.hbm [shape: bf16[768,512], index: 1, kind: input, shape index: {}]
  %s2 = inlined_call_operand.hbm [shape: f32[1,512], index: 2, kind: input, shape index: {}]
  %s3 = inlined_call_operand.hbm [shape: bf16[512,256], index: 3, kind: input, shape index: {}]
  %s4 = inlined_call_operand.vmem [shape: f32[1,256], index: 4, kind: input, shape index: {}]
  %s5 = inlined_call_operand.hbm [shape: bf16[256,128], index: 5, kind: input, shape index: {}]
  %s6 = inlined_call_operand.vmem [shape: f32[1,128], index: 6, kind: input, shape index: {}]
  %s7 = inlined_call_operand.hbm [shape: bf16[128,128], index: 7, kind: input, shape index: {}]
  %s8 = inlined_call_operand.vmem [shape: f32[1,128], index: 8, kind: input, shape index: {}]
  %s9 = inlined_call_operand.hbm [shape: bf16[8,128], index: 9, kind: output, shape index: {}]
  %s10 = sld [smem:[#allocation0]]
  $region70: #{tpu_custom_call.1} parent=0
    _
  %s12 = ssub.s32 1, %s10
  %s13 = scalar_select 0, %s12, %s10
  $region1: #{tpu_custom_call.1} parent=0
    #allocation2 [shape = 'u8[24576]{0}', space=vmem, size = 0x6000, scoped, tag = 'input window, operand 0, single buffered']
    #allocation3 [shape = 's32[1]{0}', space=sflag, size = 0x4, scoped, tag = 'scoped memory for tpu_custom_call.1']
    #allocation4 [shape = 's32[1]{0}', space=sflag, size = 0x4, scoped, tag = 'scoped memory for tpu_custom_call.1']
    #allocation5 [shape = 'u8[786432]{0}', space=vmem, size = 0xc0000, scoped, tag = 'input window, operand 1, single buffered']
    #allocation6 [shape = 's32[1]{0}', space=sflag, size = 0x4, scoped, tag = 'scoped memory for tpu_custom_call.1']
    #allocation7 [shape = 'u8[2048]{0}', space=vmem, size = 0x800, scoped, tag = 'input window, operand 2, single buffered']
    #allocation8 [shape = 'u8[262144]{0}', space=vmem, size = 0x40000, scoped, tag = 'input window, operand 3, single buffered']
    #allocation9 [shape = 's32[1]{0}', space=sflag, size = 0x4, scoped, tag = 'scoped memory for tpu_custom_call.1']
    #allocation10 [shape = 'u8[65536]{0}', space=vmem, size = 0x10000, scoped, tag = 'input window, operand 5, single buffered']
    #allocation11 [shape = 'u8[32768]{0}', space=vmem, size = 0x8000, scoped, tag = 'input window, operand 7, single buffered']
    #allocation12 [shape = 's32[1]{0}', space=sflag, size = 0x4, scoped, tag = 'scoped memory for tpu_custom_call.1']
    #allocation13 [shape = 'u8[2048]{0}', space=vmem, size = 0x800, scoped, tag = 'output window, operand 0, single buffered']
    %14 = vsyncpa [#allocation3], 0
    %15 = vsyncpa [#allocation6], 0
    %16 = vsyncpa [#allocation9], 0
    %17 = vsyncpa [#allocation12], 0
    %18 = vsyncpa [#allocation4], 0
    // Predicated region
    $region2: #{tpu_custom_call.1} parent=1 // pred_check
      _
    $region3: #{tpu_custom_call.1} parent=1 // pred_check_branch
      %20 = sbr.rel (0) target = $region5
    $region4: #{tpu_custom_call.1} parent=1 // pred_region
      %22 = vsyncadd [#allocation3], 0
      %s24 = sshll.u32 %s0, 4
      %s25 = int_to_ptr.hbm [resolvable:$true] %s24
      %s26 = sshll.u32 [#allocation2], 4
      %s27 = int_to_ptr.vmem [resolvable:$true] %s26
      %29 = dma.hbm_to_vmem [thread:$0]  %s25, 768, %s27, [#allocation3]
    $region5: #{tpu_custom_call.1} parent=1 // pred_fallthru
      _
    // Predicated region
    $region6: #{tpu_custom_call.1} parent=1 // pred_check
      _
    $region7: #{tpu_custom_call.1} parent=1 // pred_check_branch
      %31 = sbr.rel (0) target = $region9
    $region8: #{tpu_custom_call.1} parent=1 // pred_region
      %33 = vsyncadd [#allocation6], 0
      %s34 = sshll.u32 %s1, 4
      %s35 = int_to_ptr.hbm [resolvable:$true] %s34
      %s36 = sshll.u32 [#allocation5], 4
      %s37 = int_to_ptr.vmem [resolvable:$true] %s36
      %42 = dma.hbm_to_vmem [thread:$0]  %s35, 24576, %s37, [#allocation6], 256, 256, 16
    $region9: #{tpu_custom_call.1} parent=1 // pred_fallthru
      _
    // Predicated region
    $region10: #{tpu_custom_call.1} parent=1 // pred_check
      _
    $region11: #{tpu_custom_call.1} parent=1 // pred_check_branch
      %44 = sbr.rel (0) target = $region13
    $region12: #{tpu_custom_call.1} parent=1 // pred_region
      %46 = vsyncadd [#allocation6], 0
      %s48 = sshll.u32 %s2, 4
      %s49 = int_to_ptr.hbm [resolvable:$true] %s48
      %s50 = sshll.u32 [#allocation7], 4
      %s51 = int_to_ptr.vmem [resolvable:$true] %s50
      %53 = dma.hbm_to_vmem [thread:$0]  %s49, 64, %s51, [#allocation6]
    $region13: #{tpu_custom_call.1} parent=1 // pred_fallthru
      _
    // Predicated region
    $region14: #{tpu_custom_call.1} parent=1 // pred_check
      _
    $region15: #{tpu_custom_call.1} parent=1 // pred_check_branch
      %55 = sbr.rel (0) target = $region17
    $region16: #{tpu_custom_call.1} parent=1 // pred_region
      %57 = vsyncadd [#allocation9], 0
      %s58 = sshll.u32 %s3, 4
      %s59 = int_to_ptr.hbm [resolvable:$true] %s58
      %s60 = sshll.u32 [#allocation8], 4
      %s61 = int_to_ptr.vmem [resolvable:$true] %s60
      %66 = dma.hbm_to_vmem [thread:$0]  %s59, 8192, %s61, [#allocation9], 128, 128, 8
    $region17: #{tpu_custom_call.1} parent=1 // pred_fallthru
      _
    // Predicated region
    $region18: #{tpu_custom_call.1} parent=1 // pred_check
      _
    $region19: #{tpu_custom_call.1} parent=1 // pred_check_branch
      %68 = sbr.rel (0) target = $region21
    $region20: #{tpu_custom_call.1} parent=1 // pred_region
      _
    $region21: #{tpu_custom_call.1} parent=1 // pred_fallthru
      _
    // Predicated region
    $region22: #{tpu_custom_call.1} parent=1 // pred_check
      _
    $region23: #{tpu_custom_call.1} parent=1 // pred_check_branch
      %70 = sbr.rel (0) target = $region25
    $region24: #{tpu_custom_call.1} parent=1 // pred_region
      %72 = vsyncadd [#allocation9], 0
      %s73 = sshll.u32 %s5, 4
      %s74 = int_to_ptr.hbm [resolvable:$true] %s73
      %s75 = sshll.u32 [#allocation10], 4
      %s76 = int_to_ptr.vmem [resolvable:$true] %s75
      %81 = dma.hbm_to_vmem [thread:$0]  %s74, 2048, %s76, [#allocation9], 64, 64, 4
    $region25: #{tpu_custom_call.1} parent=1 // pred_fallthru
      _
    // Predicated region
    $region26: #{tpu_custom_call.1} parent=1 // pred_check
      _
    $region27: #{tpu_custom_call.1} parent=1 // pred_check_branch
      %83 = sbr.rel (0) target = $region29
    $region28: #{tpu_custom_call.1} parent=1 // pred_region
      _
    $region29: #{tpu_custom_call.1} parent=1 // pred_fallthru
      _
    // Predicated region
    $region30: #{tpu_custom_call.1} parent=1 // pred_check
      _
    $region31: #{tpu_custom_call.1} parent=1 // pred_check_branch
      %85 = sbr.rel (0) target = $region33
    $region32: #{tpu_custom_call.1} parent=1 // pred_region
      %87 = vsyncadd [#allocation12], 0
      %s88 = sshll.u32 %s7, 4
      %s89 = int_to_ptr.hbm [resolvable:$true] %s88
      %s90 = sshll.u32 [#allocation11], 4
      %s91 = int_to_ptr.vmem [resolvable:$true] %s90
      %96 = dma.hbm_to_vmem [thread:$0]  %s89, 1024, %s91, [#allocation12], 64, 64, 4
    $region33: #{tpu_custom_call.1} parent=1 // pred_fallthru
      _
    // Predicated region
    $region34: #{tpu_custom_call.1} parent=1 // pred_check
      _
    $region35: #{tpu_custom_call.1} parent=1 // pred_check_branch
      %98 = sbr.rel (0) target = $region37
    $region36: #{tpu_custom_call.1} parent=1 // pred_region
      _
    $region37: #{tpu_custom_call.1} parent=1 // pred_fallthru
      _
    // Predicated region
    $region38: #{tpu_custom_call.1} parent=1 // pred_check
      _
    $region39: #{tpu_custom_call.1} parent=1 // pred_check_branch
      %100 = sbr.rel (0) target = $region41
    $region40: #{tpu_custom_call.1} parent=1 // pred_region
      %102 = dma.done [#allocation3], 768
    $region41: #{tpu_custom_call.1} parent=1 // pred_fallthru
      _
    // Predicated region
    $region42: #{tpu_custom_call.1} parent=1 // pred_check
      _
    $region43: #{tpu_custom_call.1} parent=1 // pred_check_branch
      %104 = sbr.rel (0) target = $region45
    $region44: #{tpu_custom_call.1} parent=1 // pred_region
      %106 = dma.done [#allocation6], 24576
    $region45: #{tpu_custom_call.1} parent=1 // pred_fallthru
      _
    // Predicated region
    $region46: #{tpu_custom_call.1} parent=1 // pred_check
      _
    $region47: #{tpu_custom_call.1} parent=1 // pred_check_branch
      %108 = sbr.rel (0) target = $region49
    $region48: #{tpu_custom_call.1} parent=1 // pred_region
      %110 = dma.done [#allocation6], 64
    $region49: #{tpu_custom_call.1} parent=1 // pred_fallthru
      _
    // Predicated region
    $region50: #{tpu_custom_call.1} parent=1 // pred_check
      _
    $region51: #{tpu_custom_call.1} parent=1 // pred_check_branch
      %112 = sbr.rel (0) target = $region53
    $region52: #{tpu_custom_call.1} parent=1 // pred_region
      %114 = dma.done [#allocation9], 8192
    $region53: #{tpu_custom_call.1} parent=1 // pred_fallthru
      _
    // Predicated region
    $region54: #{tpu_custom_call.1} parent=1 // pred_check
      _
    $region55: #{tpu_custom_call.1} parent=1 // pred_check_branch
      %116 = sbr.rel (0) target = $region57
    $region56: #{tpu_custom_call.1} parent=1 // pred_region
      %118 = dma.done [#allocation9], 2048
    $region57: #{tpu_custom_call.1} parent=1 // pred_fallthru
      _
    // Predicated region
    $region58: #{tpu_custom_call.1} parent=1 // pred_check
      _
    $region59: #{tpu_custom_call.1} parent=1 // pred_check_branch
      %120 = sbr.rel (0) target = $region61
    $region60: #{tpu_custom_call.1} parent=1 // pred_region
      %122 = dma.done [#allocation12], 1024
    $region61: #{tpu_custom_call.1} parent=1 // pred_fallthru
      _
    %v123 = vld [vmem:[#allocation2] sm:$0xff]
    %v124 = vld [vmem:[#allocation2 + $0x8] sm:$0xff]
    %v125 = vld [vmem:[#allocation2 + $0x10] sm:$0xff]
    %v126 = vld [vmem:[#allocation2 + $0x18] sm:$0xff]
    %v127 = vld [vmem:[#allocation2 + $0x20] sm:$0xff]
    %v128 = vld [vmem:[#allocation2 + $0x28] sm:$0xff]
    %v129 = vpack.c.bf16 %v123, %v123
    %v130 = vpack.c.bf16 %v124, %v124
    %v131 = vpack.c.bf16 %v125, %v125
    %v132 = vpack.c.bf16 %v126, %v126
    %v133 = vpack.c.bf16 %v127, %v127
    %v134 = vpack.c.bf16 %v128, %v128
    %v135 = vld [vmem:[#allocation5] sm:$0xff]
    %v136 = vld [vmem:[#allocation5 + $0x8] sm:$0xff]
    %v137 = vld [vmem:[#allocation5 + $0x10] sm:$0xff]
    %v138 = vld [vmem:[#allocation5 + $0x18] sm:$0xff]
    %v139 = vld [vmem:[#allocation5 + $0x20] sm:$0xff]
    %v140 = vld [vmem:[#allocation5 + $0x28] sm:$0xff]
    %v141 = vld [vmem:[#allocation5 + $0x30] sm:$0xff]
    %v142 = vld [vmem:[#allocation5 + $0x38] sm:$0xff]
    %v143 = vld [vmem:[#allocation5 + $0x40] sm:$0xff]
    %v144 = vld [vmem:[#allocation5 + $0x48] sm:$0xff]
    %v145 = vld [vmem:[#allocation5 + $0x50] sm:$0xff]
    %v146 = vld [vmem:[#allocation5 + $0x58] sm:$0xff]
    %v147 = vld [vmem:[#allocation5 + $0x60] sm:$0xff]
    %v148 = vld [vmem:[#allocation5 + $0x68] sm:$0xff]
    %v149 = vld [vmem:[#allocation5 + $0x70] sm:$0xff]
    %v150 = vld [vmem:[#allocation5 + $0x78] sm:$0xff]
    %v151 = vld [vmem:[#allocation5 + $0x80] sm:$0xff]
    %v152 = vld [vmem:[#allocation5 + $0x88] sm:$0xff]
    %v153 = vld [vmem:[#allocation5 + $0x90] sm:$0xff]
    %v154 = vld [vmem:[#allocation5 + $0x98] sm:$0xff]
    %v155 = vld [vmem:[#allocation5 + $0xa0] sm:$0xff]
    %v156 = vld [vmem:[#allocation5 + $0xa8] sm:$0xff]
    %v157 = vld [vmem:[#allocation5 + $0xb0] sm:$0xff]
    %v158 = vld [vmem:[#allocation5 + $0xb8] sm:$0xff]
    %v159 = vld [vmem:[#allocation5 + $0xc0] sm:$0xff]
    %v160 = vld [vmem:[#allocation5 + $0xc8] sm:$0xff]
    %v161 = vld [vmem:[#allocation5 + $0xd0] sm:$0xff]
    %v162 = vld [vmem:[#allocation5 + $0xd8] sm:$0xff]
    %v163 = vld [vmem:[#allocation5 + $0xe0] sm:$0xff]
    %v164 = vld [vmem:[#allocation5 + $0xe8] sm:$0xff]
    %v165 = vld [vmem:[#allocation5 + $0xf0] sm:$0xff]
    %v166 = vld [vmem:[#allocation5 + $0xf8] sm:$0xff]
    %v167 = vld [vmem:[#allocation5 + $0x100] sm:$0xff]
    %v168 = vld [vmem:[#allocation5 + $0x108] sm:$0xff]
    %v169 = vld [vmem:[#allocation5 + $0x110] sm:$0xff]
    %v170 = vld [vmem:[#allocation5 + $0x118] sm:$0xff]
    %v171 = vld [vmem:[#allocation5 + $0x120] sm:$0xff]
    %v172 = vld [vmem:[#allocation5 + $0x128] sm:$0xff]
    %v173 = vld [vmem:[#allocation5 + $0x130] sm:$0xff]
    %v174 = vld [vmem:[#allocation5 + $0x138] sm:$0xff]
    %v175 = vld [vmem:[#allocation5 + $0x140] sm:$0xff]
    %v176 = vld [vmem:[#allocation5 + $0x148] sm:$0xff]
    %v177 = vld [vmem:[#allocation5 + $0x150] sm:$0xff]
    %v178 = vld [vmem:[#allocation5 + $0x158] sm:$0xff]
    %v179 = vld [vmem:[#allocation5 + $0x160] sm:$0xff]
    %v180 = vld [vmem:[#allocation5 + $0x168] sm:$0xff]
    %v181 = vld [vmem:[#allocation5 + $0x170] sm:$0xff]
    %v182 = vld [vmem:[#allocation5 + $0x178] sm:$0xff]
    %v183 = vld [vmem:[#allocation5 + $0x180] sm:$0xff]
    %v184 = vld [vmem:[#allocation5 + $0x188] sm:$0xff]
    %v185 = vld [vmem:[#allocation5 + $0x190] sm:$0xff]
    %v186 = vld [vmem:[#allocation5 + $0x198] sm:$0xff]
    %v187 = vld [vmem:[#allocation5 + $0x1a0] sm:$0xff]
    %v188 = vld [vmem:[#allocation5 + $0x1a8] sm:$0xff]
    %v189 = vld [vmem:[#allocation5 + $0x1b0] sm:$0xff]
    %v190 = vld [vmem:[#allocation5 + $0x1b8] sm:$0xff]
    %v191 = vld [vmem:[#allocation5 + $0x1c0] sm:$0xff]
    %v192 = vld [vmem:[#allocation5 + $0x1c8] sm:$0xff]
    %v193 = vld [vmem:[#allocation5 + $0x1d0] sm:$0xff]
    %v194 = vld [vmem:[#allocation5 + $0x1d8] sm:$0xff]
    %v195 = vld [vmem:[#allocation5 + $0x1e0] sm:$0xff]
    %v196 = vld [vmem:[#allocation5 + $0x1e8] sm:$0xff]
    %v197 = vld [vmem:[#allocation5 + $0x1f0] sm:$0xff]
    %v198 = vld [vmem:[#allocation5 + $0x1f8] sm:$0xff]
    %v199 = vld [vmem:[#allocation5 + $0x200] sm:$0xff]
    %v200 = vld [vmem:[#allocation5 + $0x208] sm:$0xff]
    %v201 = vld [vmem:[#allocation5 + $0x210] sm:$0xff]
    %v202 = vld [vmem:[#allocation5 + $0x218] sm:$0xff]
    %v203 = vld [vmem:[#allocation5 + $0x220] sm:$0xff]
    %v204 = vld [vmem:[#allocation5 + $0x228] sm:$0xff]
    %v205 = vld [vmem:[#allocation5 + $0x230] sm:$0xff]
    %v206 = vld [vmem:[#allocation5 + $0x238] sm:$0xff]
    %v207 = vld [vmem:[#allocation5 + $0x240] sm:$0xff]
    %v208 = vld [vmem:[#allocation5 + $0x248] sm:$0xff]
    %v209 = vld [vmem:[#allocation5 + $0x250] sm:$0xff]
    %v210 = vld [vmem:[#allocation5 + $0x258] sm:$0xff]
    %v211 = vld [vmem:[#allocation5 + $0x260] sm:$0xff]
    %v212 = vld [vmem:[#allocation5 + $0x268] sm:$0xff]
    %v213 = vld [vmem:[#allocation5 + $0x270] sm:$0xff]
    %v214 = vld [vmem:[#allocation5 + $0x278] sm:$0xff]
    %v215 = vld [vmem:[#allocation5 + $0x280] sm:$0xff]
    %v216 = vld [vmem:[#allocation5 + $0x288] sm:$0xff]
    %v217 = vld [vmem:[#allocation5 + $0x290] sm:$0xff]
    %v218 = vld [vmem:[#allocation5 + $0x298] sm:$0xff]
    %v219 = vld [vmem:[#allocation5 + $0x2a0] sm:$0xff]
    %v220 = vld [vmem:[#allocation5 + $0x2a8] sm:$0xff]
    %v221 = vld [vmem:[#allocation5 + $0x2b0] sm:$0xff]
    %v222 = vld [vmem:[#allocation5 + $0x2b8] sm:$0xff]
    %v223 = vld [vmem:[#allocation5 + $0x2c0] sm:$0xff]
    %v224 = vld [vmem:[#allocation5 + $0x2c8] sm:$0xff]
    %v225 = vld [vmem:[#allocation5 + $0x2d0] sm:$0xff]
    %v226 = vld [vmem:[#allocation5 + $0x2d8] sm:$0xff]
    %v227 = vld [vmem:[#allocation5 + $0x2e0] sm:$0xff]
    %v228 = vld [vmem:[#allocation5 + $0x2e8] sm:$0xff]
    %v229 = vld [vmem:[#allocation5 + $0x2f0] sm:$0xff]
    %v230 = vld [vmem:[#allocation5 + $0x2f8] sm:$0xff]
    %v231 = vld [vmem:[#allocation5 + $0x300] sm:$0xff]
    %v232 = vld [vmem:[#allocation5 + $0x308] sm:$0xff]
    %v233 = vld [vmem:[#allocation5 + $0x310] sm:$0xff]
    %v234 = vld [vmem:[#allocation5 + $0x318] sm:$0xff]
    %v235 = vld [vmem:[#allocation5 + $0x320] sm:$0xff]
    %v236 = vld [vmem:[#allocation5 + $0x328] sm:$0xff]
    %v237 = vld [vmem:[#allocation5 + $0x330] sm:$0xff]
    %v238 = vld [vmem:[#allocation5 + $0x338] sm:$0xff]
    %v239 = vld [vmem:[#allocation5 + $0x340] sm:$0xff]
    %v240 = vld [vmem:[#allocation5 + $0x348] sm:$0xff]
    %v241 = vld [vmem:[#allocation5 + $0x350] sm:$0xff]
    %v242 = vld [vmem:[#allocation5 + $0x358] sm:$0xff]
    %v243 = vld [vmem:[#allocation5 + $0x360] sm:$0xff]
    %v244 = vld [vmem:[#allocation5 + $0x368] sm:$0xff]
    %v245 = vld [vmem:[#allocation5 + $0x370] sm:$0xff]
    %v246 = vld [vmem:[#allocation5 + $0x378] sm:$0xff]
    %v247 = vld [vmem:[#allocation5 + $0x380] sm:$0xff]
    %v248 = vld [vmem:[#allocation5 + $0x388] sm:$0xff]
    %v249 = vld [vmem:[#allocation5 + $0x390] sm:$0xff]
    %v250 = vld [vmem:[#allocation5 + $0x398] sm:$0xff]
    %v251 = vld [vmem:[#allocation5 + $0x3a0] sm:$0xff]
    %v252 = vld [vmem:[#allocation5 + $0x3a8] sm:$0xff]
    %v253 = vld [vmem:[#allocation5 + $0x3b0] sm:$0xff]
    %v254 = vld [vmem:[#allocation5 + $0x3b8] sm:$0xff]
    %v255 = vld [vmem:[#allocation5 + $0x3c0] sm:$0xff]
    %v256 = vld [vmem:[#allocation5 + $0x3c8] sm:$0xff]
    %v257 = vld [vmem:[#allocation5 + $0x3d0] sm:$0xff]
    %v258 = vld [vmem:[#allocation5 + $0x3d8] sm:$0xff]
    %v259 = vld [vmem:[#allocation5 + $0x3e0] sm:$0xff]
    %v260 = vld [vmem:[#allocation5 + $0x3e8] sm:$0xff]
    %v261 = vld [vmem:[#allocation5 + $0x3f0] sm:$0xff]
    %v262 = vld [vmem:[#allocation5 + $0x3f8] sm:$0xff]
    %v263 = vld [vmem:[#allocation5 + $0x400] sm:$0xff]
    %v264 = vld [vmem:[#allocation5 + $0x408] sm:$0xff]
    %v265 = vld [vmem:[#allocation5 + $0x410] sm:$0xff]
    %v266 = vld [vmem:[#allocation5 + $0x418] sm:$0xff]
    %v267 = vld [vmem:[#allocation5 + $0x420] sm:$0xff]
    %v268 = vld [vmem:[#allocation5 + $0x428] sm:$0xff]
    %v269 = vld [vmem:[#allocation5 + $0x430] sm:$0xff]
    %v270 = vld [vmem:[#allocation5 + $0x438] sm:$0xff]
    %v271 = vld [vmem:[#allocation5 + $0x440] sm:$0xff]
    %v272 = vld [vmem:[#allocation5 + $0x448] sm:$0xff]
    %v273 = vld [vmem:[#allocation5 + $0x450] sm:$0xff]
    %v274 = vld [vmem:[#allocation5 + $0x458] sm:$0xff]
    %v275 = vld [vmem:[#allocation5 + $0x460] sm:$0xff]
    %v276 = vld [vmem:[#allocation5 + $0x468] sm:$0xff]
    %v277 = vld [vmem:[#allocation5 + $0x470] sm:$0xff]
    %v278 = vld [vmem:[#allocation5 + $0x478] sm:$0xff]
    %v279 = vld [vmem:[#allocation5 + $0x480] sm:$0xff]
    %v280 = vld [vmem:[#allocation5 + $0x488] sm:$0xff]
    %v281 = vld [vmem:[#allocation5 + $0x490] sm:$0xff]
    %v282 = vld [vmem:[#allocation5 + $0x498] sm:$0xff]
    %v283 = vld [vmem:[#allocation5 + $0x4a0] sm:$0xff]
    %v284 = vld [vmem:[#allocation5 + $0x4a8] sm:$0xff]
    %v285 = vld [vmem:[#allocation5 + $0x4b0] sm:$0xff]
    %v286 = vld [vmem:[#allocation5 + $0x4b8] sm:$0xff]
    %v287 = vld [vmem:[#allocation5 + $0x4c0] sm:$0xff]
    %v288 = vld [vmem:[#allocation5 + $0x4c8] sm:$0xff]
    %v289 = vld [vmem:[#allocation5 + $0x4d0] sm:$0xff]
    %v290 = vld [vmem:[#allocation5 + $0x4d8] sm:$0xff]
    %v291 = vld [vmem:[#allocation5 + $0x4e0] sm:$0xff]
    %v292 = vld [vmem:[#allocation5 + $0x4e8] sm:$0xff]
    %v293 = vld [vmem:[#allocation5 + $0x4f0] sm:$0xff]
    %v294 = vld [vmem:[#allocation5 + $0x4f8] sm:$0xff]
    %v295 = vld [vmem:[#allocation5 + $0x500] sm:$0xff]
    %v296 = vld [vmem:[#allocation5 + $0x508] sm:$0xff]
    %v297 = vld [vmem:[#allocation5 + $0x510] sm:$0xff]
    %v298 = vld [vmem:[#allocation5 + $0x518] sm:$0xff]
    %v299 = vld [vmem:[#allocation5 + $0x520] sm:$0xff]
    %v300 = vld [vmem:[#allocation5 + $0x528] sm:$0xff]
    %v301 = vld [vmem:[#allocation5 + $0x530] sm:$0xff]
    %v302 = vld [vmem:[#allocation5 + $0x538] sm:$0xff]
    %v303 = vld [vmem:[#allocation5 + $0x540] sm:$0xff]
    %v304 = vld [vmem:[#allocation5 + $0x548] sm:$0xff]
    %v305 = vld [vmem:[#allocation5 + $0x550] sm:$0xff]
    %v306 = vld [vmem:[#allocation5 + $0x558] sm:$0xff]
    %v307 = vld [vmem:[#allocation5 + $0x560] sm:$0xff]
    %v308 = vld [vmem:[#allocation5 + $0x568] sm:$0xff]
    %v309 = vld [vmem:[#allocation5 + $0x570] sm:$0xff]
    %v310 = vld [vmem:[#allocation5 + $0x578] sm:$0xff]
    %v311 = vld [vmem:[#allocation5 + $0x580] sm:$0xff]
    %v312 = vld [vmem:[#allocation5 + $0x588] sm:$0xff]
    %v313 = vld [vmem:[#allocation5 + $0x590] sm:$0xff]
    %v314 = vld [vmem:[#allocation5 + $0x598] sm:$0xff]
    %v315 = vld [vmem:[#allocation5 + $0x5a0] sm:$0xff]
    %v316 = vld [vmem:[#allocation5 + $0x5a8] sm:$0xff]
    %v317 = vld [vmem:[#allocation5 + $0x5b0] sm:$0xff]
    %v318 = vld [vmem:[#allocation5 + $0x5b8] sm:$0xff]
    %v319 = vld [vmem:[#allocation5 + $0x5c0] sm:$0xff]
    %v320 = vld [vmem:[#allocation5 + $0x5c8] sm:$0xff]
    %v321 = vld [vmem:[#allocation5 + $0x5d0] sm:$0xff]
    %v322 = vld [vmem:[#allocation5 + $0x5d8] sm:$0xff]
    %v323 = vld [vmem:[#allocation5 + $0x5e0] sm:$0xff]
    %v324 = vld [vmem:[#allocation5 + $0x5e8] sm:$0xff]
    %v325 = vld [vmem:[#allocation5 + $0x5f0] sm:$0xff]
    %v326 = vld [vmem:[#allocation5 + $0x5f8] sm:$0xff]
    %v327 = vld [vmem:[#allocation7] sm:$0xf]
    %v329 = vperm.slane %v327, 0
    %v330 = vperm.slane %v327, 1
    %v331 = vperm.slane %v327, 2
    %v332 = vperm.slane %v327, 3
    %v529 = vunpack.c.l.b16 %v135
    %v530 = vunpack.c.h.b16 %v135
    %v531 = vunpack.c.l.b16 %v136
    %v532 = vunpack.c.h.b16 %v136
    %v533 = vunpack.c.l.b16 %v137
    %v534 = vunpack.c.h.b16 %v137
    %v535 = vunpack.c.l.b16 %v138
    %v536 = vunpack.c.h.b16 %v138
    %v537 = vunpack.c.l.b16 %v139
    %v538 = vunpack.c.h.b16 %v139
    %v539 = vunpack.c.l.b16 %v140
    %v540 = vunpack.c.h.b16 %v140
    %v541 = vunpack.c.l.b16 %v141
    %v542 = vunpack.c.h.b16 %v141
    %v543 = vunpack.c.l.b16 %v142
    %v544 = vunpack.c.h.b16 %v142
    %v545 = vunpack.c.l.b16 %v143
    %v546 = vunpack.c.h.b16 %v143
    %v547 = vunpack.c.l.b16 %v144
    %v548 = vunpack.c.h.b16 %v144
    %v549 = vunpack.c.l.b16 %v145
    %v550 = vunpack.c.h.b16 %v145
    %v551 = vunpack.c.l.b16 %v146
    %v552 = vunpack.c.h.b16 %v146
    %v553 = vunpack.c.l.b16 %v147
    %v554 = vunpack.c.h.b16 %v147
    %v555 = vunpack.c.l.b16 %v148
    %v556 = vunpack.c.h.b16 %v148
    %v557 = vunpack.c.l.b16 %v149
    %v558 = vunpack.c.h.b16 %v149
    %v559 = vunpack.c.l.b16 %v150
    %v560 = vunpack.c.h.b16 %v150
    %v561 = vunpack.c.l.b16 %v151
    %v562 = vunpack.c.h.b16 %v151
    %v563 = vunpack.c.l.b16 %v152
    %v564 = vunpack.c.h.b16 %v152
    %v565 = vunpack.c.l.b16 %v153
    %v566 = vunpack.c.h.b16 %v153
    %v567 = vunpack.c.l.b16 %v154
    %v568 = vunpack.c.h.b16 %v154
    %v569 = vunpack.c.l.b16 %v155
    %v570 = vunpack.c.h.b16 %v155
    %v571 = vunpack.c.l.b16 %v156
    %v572 = vunpack.c.h.b16 %v156
    %v573 = vunpack.c.l.b16 %v157
    %v574 = vunpack.c.h.b16 %v157
    %v575 = vunpack.c.l.b16 %v158
    %v576 = vunpack.c.h.b16 %v158
    %v577 = vunpack.c.l.b16 %v159
    %v578 = vunpack.c.h.b16 %v159
    %v579 = vunpack.c.l.b16 %v160
    %v580 = vunpack.c.h.b16 %v160
    %v581 = vunpack.c.l.b16 %v161
    %v582 = vunpack.c.h.b16 %v161
    %v583 = vunpack.c.l.b16 %v162
    %v584 = vunpack.c.h.b16 %v162
    %v585 = vunpack.c.l.b16 %v163
    %v586 = vunpack.c.h.b16 %v163
    %v587 = vunpack.c.l.b16 %v164
    %v588 = vunpack.c.h.b16 %v164
    %v589 = vunpack.c.l.b16 %v165
    %v590 = vunpack.c.h.b16 %v165
    %v591 = vunpack.c.l.b16 %v166
    %v592 = vunpack.c.h.b16 %v166
    %v593 = vunpack.c.l.b16 %v167
    %v594 = vunpack.c.h.b16 %v167
    %v595 = vunpack.c.l.b16 %v168
    %v596 = vunpack.c.h.b16 %v168
    %v597 = vunpack.c.l.b16 %v169
    %v598 = vunpack.c.h.b16 %v169
    %v599 = vunpack.c.l.b16 %v170
    %v600 = vunpack.c.h.b16 %v170
    %v601 = vunpack.c.l.b16 %v171
    %v602 = vunpack.c.h.b16 %v171
    %v603 = vunpack.c.l.b16 %v172
    %v604 = vunpack.c.h.b16 %v172
    %v605 = vunpack.c.l.b16 %v173
    %v606 = vunpack.c.h.b16 %v173
    %v607 = vunpack.c.l.b16 %v174
    %v608 = vunpack.c.h.b16 %v174
    %v609 = vunpack.c.l.b16 %v175
    %v610 = vunpack.c.h.b16 %v175
    %v611 = vunpack.c.l.b16 %v176
    %v612 = vunpack.c.h.b16 %v176
    %v613 = vunpack.c.l.b16 %v177
    %v614 = vunpack.c.h.b16 %v177
    %v615 = vunpack.c.l.b16 %v178
    %v616 = vunpack.c.h.b16 %v178
    %v617 = vunpack.c.l.b16 %v179
    %v618 = vunpack.c.h.b16 %v179
    %v619 = vunpack.c.l.b16 %v180
    %v620 = vunpack.c.h.b16 %v180
    %v621 = vunpack.c.l.b16 %v181
    %v622 = vunpack.c.h.b16 %v181
    %v623 = vunpack.c.l.b16 %v182
    %v624 = vunpack.c.h.b16 %v182
    %v625 = vunpack.c.l.b16 %v183
    %v626 = vunpack.c.h.b16 %v183
    %v627 = vunpack.c.l.b16 %v184
    %v628 = vunpack.c.h.b16 %v184
    %v629 = vunpack.c.l.b16 %v185
    %v630 = vunpack.c.h.b16 %v185
    %v631 = vunpack.c.l.b16 %v186
    %v632 = vunpack.c.h.b16 %v186
    %v633 = vunpack.c.l.b16 %v187
    %v634 = vunpack.c.h.b16 %v187
    %v635 = vunpack.c.l.b16 %v188
    %v636 = vunpack.c.h.b16 %v188
    %v637 = vunpack.c.l.b16 %v189
    %v638 = vunpack.c.h.b16 %v189
    %v639 = vunpack.c.l.b16 %v190
    %v640 = vunpack.c.h.b16 %v190
    %v641 = vunpack.c.l.b16 %v191
    %v642 = vunpack.c.h.b16 %v191
    %v643 = vunpack.c.l.b16 %v192
    %v644 = vunpack.c.h.b16 %v192
    %v645 = vunpack.c.l.b16 %v193
    %v646 = vunpack.c.h.b16 %v193
    %v647 = vunpack.c.l.b16 %v194
    %v648 = vunpack.c.h.b16 %v194
    %v649 = vunpack.c.l.b16 %v195
    %v650 = vunpack.c.h.b16 %v195
    %v651 = vunpack.c.l.b16 %v196
    %v652 = vunpack.c.h.b16 %v196
    %v653 = vunpack.c.l.b16 %v197
    %v654 = vunpack.c.h.b16 %v197
    %v655 = vunpack.c.l.b16 %v198
    %v656 = vunpack.c.h.b16 %v198
    %v657 = vunpack.c.l.b16 %v199
    %v658 = vunpack.c.h.b16 %v199
    %v659 = vunpack.c.l.b16 %v200
    %v660 = vunpack.c.h.b16 %v200
    %v661 = vunpack.c.l.b16 %v201
    %v662 = vunpack.c.h.b16 %v201
    %v663 = vunpack.c.l.b16 %v202
    %v664 = vunpack.c.h.b16 %v202
    %v665 = vunpack.c.l.b16 %v203
    %v666 = vunpack.c.h.b16 %v203
    %v667 = vunpack.c.l.b16 %v204
    %v668 = vunpack.c.h.b16 %v204
    %v669 = vunpack.c.l.b16 %v205
    %v670 = vunpack.c.h.b16 %v205
    %v671 = vunpack.c.l.b16 %v206
    %v672 = vunpack.c.h.b16 %v206
    %v673 = vunpack.c.l.b16 %v207
    %v674 = vunpack.c.h.b16 %v207
    %v675 = vunpack.c.l.b16 %v208
    %v676 = vunpack.c.h.b16 %v208
    %v677 = vunpack.c.l.b16 %v209
    %v678 = vunpack.c.h.b16 %v209
    %v679 = vunpack.c.l.b16 %v210
    %v680 = vunpack.c.h.b16 %v210
    %v681 = vunpack.c.l.b16 %v211
    %v682 = vunpack.c.h.b16 %v211
    %v683 = vunpack.c.l.b16 %v212
    %v684 = vunpack.c.h.b16 %v212
    %v685 = vunpack.c.l.b16 %v213
    %v686 = vunpack.c.h.b16 %v213
    %v687 = vunpack.c.l.b16 %v214
    %v688 = vunpack.c.h.b16 %v214
    %v689 = vunpack.c.l.b16 %v215
    %v690 = vunpack.c.h.b16 %v215
    %v691 = vunpack.c.l.b16 %v216
    %v692 = vunpack.c.h.b16 %v216
    %v693 = vunpack.c.l.b16 %v217
    %v694 = vunpack.c.h.b16 %v217
    %v695 = vunpack.c.l.b16 %v218
    %v696 = vunpack.c.h.b16 %v218
    %v697 = vunpack.c.l.b16 %v219
    %v698 = vunpack.c.h.b16 %v219
    %v699 = vunpack.c.l.b16 %v220
    %v700 = vunpack.c.h.b16 %v220
    %v701 = vunpack.c.l.b16 %v221
    %v702 = vunpack.c.h.b16 %v221
    %v703 = vunpack.c.l.b16 %v222
    %v704 = vunpack.c.h.b16 %v222
    %v705 = vunpack.c.l.b16 %v223
    %v706 = vunpack.c.h.b16 %v223
    %v707 = vunpack.c.l.b16 %v224
    %v708 = vunpack.c.h.b16 %v224
    %v709 = vunpack.c.l.b16 %v225
    %v710 = vunpack.c.h.b16 %v225
    %v711 = vunpack.c.l.b16 %v226
    %v712 = vunpack.c.h.b16 %v226
    %v713 = vunpack.c.l.b16 %v227
    %v714 = vunpack.c.h.b16 %v227
    %v715 = vunpack.c.l.b16 %v228
    %v716 = vunpack.c.h.b16 %v228
    %v717 = vunpack.c.l.b16 %v229
    %v718 = vunpack.c.h.b16 %v229
    %v719 = vunpack.c.l.b16 %v230
    %v720 = vunpack.c.h.b16 %v230
    %v721 = vunpack.c.l.b16 %v231
    %v722 = vunpack.c.h.b16 %v231
    %v723 = vunpack.c.l.b16 %v232
    %v724 = vunpack.c.h.b16 %v232
    %v725 = vunpack.c.l.b16 %v233
    %v726 = vunpack.c.h.b16 %v233
    %v727 = vunpack.c.l.b16 %v234
    %v728 = vunpack.c.h.b16 %v234
    %v729 = vunpack.c.l.b16 %v235
    %v730 = vunpack.c.h.b16 %v235
    %v731 = vunpack.c.l.b16 %v236
    %v732 = vunpack.c.h.b16 %v236
    %v733 = vunpack.c.l.b16 %v237
    %v734 = vunpack.c.h.b16 %v237
    %v735 = vunpack.c.l.b16 %v238
    %v736 = vunpack.c.h.b16 %v238
    %v737 = vunpack.c.l.b16 %v239
    %v738 = vunpack.c.h.b16 %v239
    %v739 = vunpack.c.l.b16 %v240
    %v740 = vunpack.c.h.b16 %v240
    %v741 = vunpack.c.l.b16 %v241
    %v742 = vunpack.c.h.b16 %v241
    %v743 = vunpack.c.l.b16 %v242
    %v744 = vunpack.c.h.b16 %v242
    %v745 = vunpack.c.l.b16 %v243
    %v746 = vunpack.c.h.b16 %v243
    %v747 = vunpack.c.l.b16 %v244
    %v748 = vunpack.c.h.b16 %v244
    %v749 = vunpack.c.l.b16 %v245
    %v750 = vunpack.c.h.b16 %v245
    %v751 = vunpack.c.l.b16 %v246
    %v752 = vunpack.c.h.b16 %v246
    %v753 = vunpack.c.l.b16 %v247
    %v754 = vunpack.c.h.b16 %v247
    %v755 = vunpack.c.l.b16 %v248
    %v756 = vunpack.c.h.b16 %v248
    %v757 = vunpack.c.l.b16 %v249
    %v758 = vunpack.c.h.b16 %v249
    %v759 = vunpack.c.l.b16 %v250
    %v760 = vunpack.c.h.b16 %v250
    %v761 = vunpack.c.l.b16 %v251
    %v762 = vunpack.c.h.b16 %v251
    %v763 = vunpack.c.l.b16 %v252
    %v764 = vunpack.c.h.b16 %v252
    %v765 = vunpack.c.l.b16 %v253
    %v766 = vunpack.c.h.b16 %v253
    %v767 = vunpack.c.l.b16 %v254
    %v768 = vunpack.c.h.b16 %v254
    %v769 = vunpack.c.l.b16 %v255
    %v770 = vunpack.c.h.b16 %v255
    %v771 = vunpack.c.l.b16 %v256
    %v772 = vunpack.c.h.b16 %v256
    %v773 = vunpack.c.l.b16 %v257
    %v774 = vunpack.c.h.b16 %v257
    %v775 = vunpack.c.l.b16 %v258
    %v776 = vunpack.c.h.b16 %v258
    %v777 = vunpack.c.l.b16 %v259
    %v778 = vunpack.c.h.b16 %v259
    %v779 = vunpack.c.l.b16 %v260
    %v780 = vunpack.c.h.b16 %v260
    %v781 = vunpack.c.l.b16 %v261
    %v782 = vunpack.c.h.b16 %v261
    %v783 = vunpack.c.l.b16 %v262
    %v784 = vunpack.c.h.b16 %v262
    %v785 = vunpack.c.l.b16 %v263
    %v786 = vunpack.c.h.b16 %v263
    %v787 = vunpack.c.l.b16 %v264
    %v788 = vunpack.c.h.b16 %v264
    %v789 = vunpack.c.l.b16 %v265
    %v790 = vunpack.c.h.b16 %v265
    %v791 = vunpack.c.l.b16 %v266
    %v792 = vunpack.c.h.b16 %v266
    %v793 = vunpack.c.l.b16 %v267
    %v794 = vunpack.c.h.b16 %v267
    %v795 = vunpack.c.l.b16 %v268
    %v796 = vunpack.c.h.b16 %v268
    %v797 = vunpack.c.l.b16 %v269
    %v798 = vunpack.c.h.b16 %v269
    %v799 = vunpack.c.l.b16 %v270
    %v800 = vunpack.c.h.b16 %v270
    %v801 = vunpack.c.l.b16 %v271
    %v802 = vunpack.c.h.b16 %v271
    %v803 = vunpack.c.l.b16 %v272
    %v804 = vunpack.c.h.b16 %v272
    %v805 = vunpack.c.l.b16 %v273
    %v806 = vunpack.c.h.b16 %v273
    %v807 = vunpack.c.l.b16 %v274
    %v808 = vunpack.c.h.b16 %v274
    %v809 = vunpack.c.l.b16 %v275
    %v810 = vunpack.c.h.b16 %v275
    %v811 = vunpack.c.l.b16 %v276
    %v812 = vunpack.c.h.b16 %v276
    %v813 = vunpack.c.l.b16 %v277
    %v814 = vunpack.c.h.b16 %v277
    %v815 = vunpack.c.l.b16 %v278
    %v816 = vunpack.c.h.b16 %v278
    %v817 = vunpack.c.l.b16 %v279
    %v818 = vunpack.c.h.b16 %v279
    %v819 = vunpack.c.l.b16 %v280
    %v820 = vunpack.c.h.b16 %v280
    %v821 = vunpack.c.l.b16 %v281
    %v822 = vunpack.c.h.b16 %v281
    %v823 = vunpack.c.l.b16 %v282
    %v824 = vunpack.c.h.b16 %v282
    %v825 = vunpack.c.l.b16 %v283
    %v826 = vunpack.c.h.b16 %v283
    %v827 = vunpack.c.l.b16 %v284
    %v828 = vunpack.c.h.b16 %v284
    %v829 = vunpack.c.l.b16 %v285
    %v830 = vunpack.c.h.b16 %v285
    %v831 = vunpack.c.l.b16 %v286
    %v832 = vunpack.c.h.b16 %v286
    %v833 = vunpack.c.l.b16 %v287
    %v834 = vunpack.c.h.b16 %v287
    %v835 = vunpack.c.l.b16 %v288
    %v836 = vunpack.c.h.b16 %v288
    %v837 = vunpack.c.l.b16 %v289
    %v838 = vunpack.c.h.b16 %v289
    %v839 = vunpack.c.l.b16 %v290
    %v840 = vunpack.c.h.b16 %v290
    %v841 = vunpack.c.l.b16 %v291
    %v842 = vunpack.c.h.b16 %v291
    %v843 = vunpack.c.l.b16 %v292
    %v844 = vunpack.c.h.b16 %v292
    %v845 = vunpack.c.l.b16 %v293
    %v846 = vunpack.c.h.b16 %v293
    %v847 = vunpack.c.l.b16 %v294
    %v848 = vunpack.c.h.b16 %v294
    %v849 = vunpack.c.l.b16 %v295
    %v850 = vunpack.c.h.b16 %v295
    %v851 = vunpack.c.l.b16 %v296
    %v852 = vunpack.c.h.b16 %v296
    %v853 = vunpack.c.l.b16 %v297
    %v854 = vunpack.c.h.b16 %v297
    %v855 = vunpack.c.l.b16 %v298
    %v856 = vunpack.c.h.b16 %v298
    %v857 = vunpack.c.l.b16 %v299
    %v858 = vunpack.c.h.b16 %v299
    %v859 = vunpack.c.l.b16 %v300
    %v860 = vunpack.c.h.b16 %v300
    %v861 = vunpack.c.l.b16 %v301
    %v862 = vunpack.c.h.b16 %v301
    %v863 = vunpack.c.l.b16 %v302
    %v864 = vunpack.c.h.b16 %v302
    %v865 = vunpack.c.l.b16 %v303
    %v866 = vunpack.c.h.b16 %v303
    %v867 = vunpack.c.l.b16 %v304
    %v868 = vunpack.c.h.b16 %v304
    %v869 = vunpack.c.l.b16 %v305
    %v870 = vunpack.c.h.b16 %v305
    %v871 = vunpack.c.l.b16 %v306
    %v872 = vunpack.c.h.b16 %v306
    %v873 = vunpack.c.l.b16 %v307
    %v874 = vunpack.c.h.b16 %v307
    %v875 = vunpack.c.l.b16 %v308
    %v876 = vunpack.c.h.b16 %v308
    %v877 = vunpack.c.l.b16 %v309
    %v878 = vunpack.c.h.b16 %v309
    %v879 = vunpack.c.l.b16 %v310
    %v880 = vunpack.c.h.b16 %v310
    %v881 = vunpack.c.l.b16 %v311
    %v882 = vunpack.c.h.b16 %v311
    %v883 = vunpack.c.l.b16 %v312
    %v884 = vunpack.c.h.b16 %v312
    %v885 = vunpack.c.l.b16 %v313
    %v886 = vunpack.c.h.b16 %v313
    %v887 = vunpack.c.l.b16 %v314
    %v888 = vunpack.c.h.b16 %v314
    %v889 = vunpack.c.l.b16 %v315
    %v890 = vunpack.c.h.b16 %v315
    %v891 = vunpack.c.l.b16 %v316
    %v892 = vunpack.c.h.b16 %v316
    %v893 = vunpack.c.l.b16 %v317
    %v894 = vunpack.c.h.b16 %v317
    %v895 = vunpack.c.l.b16 %v318
    %v896 = vunpack.c.h.b16 %v318
    %v897 = vunpack.c.l.b16 %v319
    %v898 = vunpack.c.h.b16 %v319
    %v899 = vunpack.c.l.b16 %v320
    %v900 = vunpack.c.h.b16 %v320
    %v901 = vunpack.c.l.b16 %v321
    %v902 = vunpack.c.h.b16 %v321
    %v903 = vunpack.c.l.b16 %v322
    %v904 = vunpack.c.h.b16 %v322
    %v905 = vunpack.c.l.b16 %v323
    %v906 = vunpack.c.h.b16 %v323
    %v907 = vunpack.c.l.b16 %v324
    %v908 = vunpack.c.h.b16 %v324
    %v909 = vunpack.c.l.b16 %v325
    %v910 = vunpack.c.h.b16 %v325
    %v911 = vunpack.c.l.b16 %v326
    %v912 = vunpack.c.h.b16 %v326
    %v913 = vpack.c.b16 %v533, %v529
    %v914 = vpack.c.b16 %v534, %v530
    %v915 = vpack.c.b16 %v535, %v531
    %v916 = vpack.c.b16 %v536, %v532
    %v917 = vpack.c.b16 %v541, %v537
    %v918 = vpack.c.b16 %v542, %v538
    %v919 = vpack.c.b16 %v543, %v539
    %v920 = vpack.c.b16 %v544, %v540
    %v921 = vpack.c.b16 %v549, %v545
    %v922 = vpack.c.b16 %v550, %v546
    %v923 = vpack.c.b16 %v551, %v547
    %v924 = vpack.c.b16 %v552, %v548
    %v925 = vpack.c.b16 %v557, %v553
    %v926 = vpack.c.b16 %v558, %v554
    %v927 = vpack.c.b16 %v559, %v555
    %v928 = vpack.c.b16 %v560, %v556
    %v929 = vpack.c.b16 %v565, %v561
    %v930 = vpack.c.b16 %v566, %v562
    %v931 = vpack.c.b16 %v567, %v563
    %v932 = vpack.c.b16 %v568, %v564
    %v933 = vpack.c.b16 %v573, %v569
    %v934 = vpack.c.b16 %v574, %v570
    %v935 = vpack.c.b16 %v575, %v571
    %v936 = vpack.c.b16 %v576, %v572
    %v937 = vpack.c.b16 %v581, %v577
    %v938 = vpack.c.b16 %v582, %v578
    %v939 = vpack.c.b16 %v583, %v579
    %v940 = vpack.c.b16 %v584, %v580
    %v941 = vpack.c.b16 %v589, %v585
    %v942 = vpack.c.b16 %v590, %v586
    %v943 = vpack.c.b16 %v591, %v587
    %v944 = vpack.c.b16 %v592, %v588
    %v945 = vpack.c.b16 %v597, %v593
    %v946 = vpack.c.b16 %v598, %v594
    %v947 = vpack.c.b16 %v599, %v595
    %v948 = vpack.c.b16 %v600, %v596
    %v949 = vpack.c.b16 %v605, %v601
    %v950 = vpack.c.b16 %v606, %v602
    %v951 = vpack.c.b16 %v607, %v603
    %v952 = vpack.c.b16 %v608, %v604
    %v953 = vpack.c.b16 %v613, %v609
    %v954 = vpack.c.b16 %v614, %v610
    %v955 = vpack.c.b16 %v615, %v611
    %v956 = vpack.c.b16 %v616, %v612
    %v957 = vpack.c.b16 %v621, %v617
    %v958 = vpack.c.b16 %v622, %v618
    %v959 = vpack.c.b16 %v623, %v619
    %v960 = vpack.c.b16 %v624, %v620
    %v961 = vpack.c.b16 %v629, %v625
    %v962 = vpack.c.b16 %v630, %v626
    %v963 = vpack.c.b16 %v631, %v627
    %v964 = vpack.c.b16 %v632, %v628
    %v965 = vpack.c.b16 %v637, %v633
    %v966 = vpack.c.b16 %v638, %v634
    %v967 = vpack.c.b16 %v639, %v635
    %v968 = vpack.c.b16 %v640, %v636
    %v969 = vpack.c.b16 %v645, %v641
    %v970 = vpack.c.b16 %v646, %v642
    %v971 = vpack.c.b16 %v647, %v643
    %v972 = vpack.c.b16 %v648, %v644
    %v973 = vpack.c.b16 %v653, %v649
    %v974 = vpack.c.b16 %v654, %v650
    %v975 = vpack.c.b16 %v655, %v651
    %v976 = vpack.c.b16 %v656, %v652
    %v977 = vpack.c.b16 %v661, %v657
    %v978 = vpack.c.b16 %v662, %v658
    %v979 = vpack.c.b16 %v663, %v659
    %v980 = vpack.c.b16 %v664, %v660
    %v981 = vpack.c.b16 %v669, %v665
    %v982 = vpack.c.b16 %v670, %v666
    %v983 = vpack.c.b16 %v671, %v667
    %v984 = vpack.c.b16 %v672, %v668
    %v985 = vpack.c.b16 %v677, %v673
    %v986 = vpack.c.b16 %v678, %v674
    %v987 = vpack.c.b16 %v679, %v675
    %v988 = vpack.c.b16 %v680, %v676
    %v989 = vpack.c.b16 %v685, %v681
    %v990 = vpack.c.b16 %v686, %v682
    %v991 = vpack.c.b16 %v687, %v683
    %v992 = vpack.c.b16 %v688, %v684
    %v993 = vpack.c.b16 %v693, %v689
    %v994 = vpack.c.b16 %v694, %v690
    %v995 = vpack.c.b16 %v695, %v691
    %v996 = vpack.c.b16 %v696, %v692
    %v997 = vpack.c.b16 %v701, %v697
    %v998 = vpack.c.b16 %v702, %v698
    %v999 = vpack.c.b16 %v703, %v699
    %v1000 = vpack.c.b16 %v704, %v700
    %v1001 = vpack.c.b16 %v709, %v705
    %v1002 = vpack.c.b16 %v710, %v706
    %v1003 = vpack.c.b16 %v711, %v707
    %v1004 = vpack.c.b16 %v712, %v708
    %v1005 = vpack.c.b16 %v717, %v713
    %v1006 = vpack.c.b16 %v718, %v714
    %v1007 = vpack.c.b16 %v719, %v715
    %v1008 = vpack.c.b16 %v720, %v716
    %v1009 = vpack.c.b16 %v725, %v721
    %v1010 = vpack.c.b16 %v726, %v722
    %v1011 = vpack.c.b16 %v727, %v723
    %v1012 = vpack.c.b16 %v728, %v724
    %v1013 = vpack.c.b16 %v733, %v729
    %v1014 = vpack.c.b16 %v734, %v730
    %v1015 = vpack.c.b16 %v735, %v731
    %v1016 = vpack.c.b16 %v736, %v732
    %v1017 = vpack.c.b16 %v741, %v737
    %v1018 = vpack.c.b16 %v742, %v738
    %v1019 = vpack.c.b16 %v743, %v739
    %v1020 = vpack.c.b16 %v744, %v740
    %v1021 = vpack.c.b16 %v749, %v745
    %v1022 = vpack.c.b16 %v750, %v746
    %v1023 = vpack.c.b16 %v751, %v747
    %v1024 = vpack.c.b16 %v752, %v748
    %v1025 = vpack.c.b16 %v757, %v753
    %v1026 = vpack.c.b16 %v758, %v754
    %v1027 = vpack.c.b16 %v759, %v755
    %v1028 = vpack.c.b16 %v760, %v756
    %v1029 = vpack.c.b16 %v765, %v761
    %v1030 = vpack.c.b16 %v766, %v762
    %v1031 = vpack.c.b16 %v767, %v763
    %v1032 = vpack.c.b16 %v768, %v764
    %v1033 = vpack.c.b16 %v773, %v769
    %v1034 = vpack.c.b16 %v774, %v770
    %v1035 = vpack.c.b16 %v775, %v771
    %v1036 = vpack.c.b16 %v776, %v772
    %v1037 = vpack.c.b16 %v781, %v777
    %v1038 = vpack.c.b16 %v782, %v778
    %v1039 = vpack.c.b16 %v783, %v779
    %v1040 = vpack.c.b16 %v784, %v780
    %v1041 = vpack.c.b16 %v789, %v785
    %v1042 = vpack.c.b16 %v790, %v786
    %v1043 = vpack.c.b16 %v791, %v787
    %v1044 = vpack.c.b16 %v792, %v788
    %v1045 = vpack.c.b16 %v797, %v793
    %v1046 = vpack.c.b16 %v798, %v794
    %v1047 = vpack.c.b16 %v799, %v795
    %v1048 = vpack.c.b16 %v800, %v796
    %v1049 = vpack.c.b16 %v805, %v801
    %v1050 = vpack.c.b16 %v806, %v802
    %v1051 = vpack.c.b16 %v807, %v803
    %v1052 = vpack.c.b16 %v808, %v804
    %v1053 = vpack.c.b16 %v813, %v809
    %v1054 = vpack.c.b16 %v814, %v810
    %v1055 = vpack.c.b16 %v815, %v811
    %v1056 = vpack.c.b16 %v816, %v812
    %v1057 = vpack.c.b16 %v821, %v817
    %v1058 = vpack.c.b16 %v822, %v818
    %v1059 = vpack.c.b16 %v823, %v819
    %v1060 = vpack.c.b16 %v824, %v820
    %v1061 = vpack.c.b16 %v829, %v825
    %v1062 = vpack.c.b16 %v830, %v826
    %v1063 = vpack.c.b16 %v831, %v827
    %v1064 = vpack.c.b16 %v832, %v828
    %v1065 = vpack.c.b16 %v837, %v833
    %v1066 = vpack.c.b16 %v838, %v834
    %v1067 = vpack.c.b16 %v839, %v835
    %v1068 = vpack.c.b16 %v840, %v836
    %v1069 = vpack.c.b16 %v845, %v841
    %v1070 = vpack.c.b16 %v846, %v842
    %v1071 = vpack.c.b16 %v847, %v843
    %v1072 = vpack.c.b16 %v848, %v844
    %v1073 = vpack.c.b16 %v853, %v849
    %v1074 = vpack.c.b16 %v854, %v850
    %v1075 = vpack.c.b16 %v855, %v851
    %v1076 = vpack.c.b16 %v856, %v852
    %v1077 = vpack.c.b16 %v861, %v857
    %v1078 = vpack.c.b16 %v862, %v858
    %v1079 = vpack.c.b16 %v863, %v859
    %v1080 = vpack.c.b16 %v864, %v860
    %v1081 = vpack.c.b16 %v869, %v865
    %v1082 = vpack.c.b16 %v870, %v866
    %v1083 = vpack.c.b16 %v871, %v867
    %v1084 = vpack.c.b16 %v872, %v868
    %v1085 = vpack.c.b16 %v877, %v873
    %v1086 = vpack.c.b16 %v878, %v874
    %v1087 = vpack.c.b16 %v879, %v875
    %v1088 = vpack.c.b16 %v880, %v876
    %v1089 = vpack.c.b16 %v885, %v881
    %v1090 = vpack.c.b16 %v886, %v882
    %v1091 = vpack.c.b16 %v887, %v883
    %v1092 = vpack.c.b16 %v888, %v884
    %v1093 = vpack.c.b16 %v893, %v889
    %v1094 = vpack.c.b16 %v894, %v890
    %v1095 = vpack.c.b16 %v895, %v891
    %v1096 = vpack.c.b16 %v896, %v892
    %v1097 = vpack.c.b16 %v901, %v897
    %v1098 = vpack.c.b16 %v902, %v898
    %v1099 = vpack.c.b16 %v903, %v899
    %v1100 = vpack.c.b16 %v904, %v900
    %v1101 = vpack.c.b16 %v909, %v905
    %v1102 = vpack.c.b16 %v910, %v906
    %v1103 = vpack.c.b16 %v911, %v907
    %v1104 = vpack.c.b16 %v912, %v908
    %1297 = vmatpush.bf16.msra.mxu0 %v941
    %1298 = vmatpush.bf16.msra.mxu0 %v937
    %1299 = vmatpush.bf16.msra.mxu0 %v933
    %1300 = vmatpush.bf16.msra.mxu0 %v929
    %1301 = vmatpush.bf16.msra.mxu0 %v925
    %1302 = vmatpush.bf16.msra.mxu0 %v921
    %1303 = vmatpush.bf16.msra.mxu0 %v917
    %1304 = vmatpush.bf16.msra.mxu0 %v913
    %1305 = vmatmul.bf16.gmra.mxu0 %v129
    %v1306 = vpop.f32.mrf.mxu0
    %v1307 = vadd.f32 %v329, %v1306
    %v1308 = vpop.f32.mrf.mxu0
    %1309 = vdwg.mxu0
    %1310 = vmatpush.bf16.msra.mxu0 %v973
    %1311 = vmatpush.bf16.msra.mxu0 %v969
    %1312 = vmatpush.bf16.msra.mxu0 %v965
    %1313 = vmatpush.bf16.msra.mxu0 %v961
    %1314 = vmatpush.bf16.msra.mxu0 %v957
    %1315 = vmatpush.bf16.msra.mxu0 %v953
    %1316 = vmatpush.bf16.msra.mxu0 %v949
    %1317 = vmatpush.bf16.msra.mxu0 %v945
    %1318 = vmatmul.bf16.gmra.mxu0 %v130
    %v1319 = vpop.f32.mrf.mxu0
    %v1320 = vadd.f32 %v1307, %v1319
    %v1321 = vpop.f32.mrf.mxu0
    %1322 = vdwg.mxu0
    %1323 = vmatpush.bf16.msra.mxu0 %v1005
    %1324 = vmatpush.bf16.msra.mxu0 %v1001
    %1325 = vmatpush.bf16.msra.mxu0 %v997
    %1326 = vmatpush.bf16.msra.mxu0 %v993
    %1327 = vmatpush.bf16.msra.mxu0 %v989
    %1328 = vmatpush.bf16.msra.mxu0 %v985
    %1329 = vmatpush.bf16.msra.mxu0 %v981
    %1330 = vmatpush.bf16.msra.mxu0 %v977
    %1331 = vmatmul.bf16.gmra.mxu0 %v131
    %v1332 = vpop.f32.mrf.mxu0
    %v1333 = vadd.f32 %v1320, %v1332
    %v1334 = vpop.f32.mrf.mxu0
    %1335 = vdwg.mxu0
    %1336 = vmatpush.bf16.msra.mxu0 %v1037
    %1337 = vmatpush.bf16.msra.mxu0 %v1033
    %1338 = vmatpush.bf16.msra.mxu0 %v1029
    %1339 = vmatpush.bf16.msra.mxu0 %v1025
    %1340 = vmatpush.bf16.msra.mxu0 %v1021
    %1341 = vmatpush.bf16.msra.mxu0 %v1017
    %1342 = vmatpush.bf16.msra.mxu0 %v1013
    %1343 = vmatpush.bf16.msra.mxu0 %v1009
    %1344 = vmatmul.bf16.gmra.mxu0 %v132
    %v1345 = vpop.f32.mrf.mxu0
    %v1346 = vadd.f32 %v1333, %v1345
    %v1347 = vpop.f32.mrf.mxu0
    %1348 = vdwg.mxu0
    %1349 = vmatpush.bf16.msra.mxu0 %v1069
    %1350 = vmatpush.bf16.msra.mxu0 %v1065
    %1351 = vmatpush.bf16.msra.mxu0 %v1061
    %1352 = vmatpush.bf16.msra.mxu0 %v1057
    %1353 = vmatpush.bf16.msra.mxu0 %v1053
    %1354 = vmatpush.bf16.msra.mxu0 %v1049
    %1355 = vmatpush.bf16.msra.mxu0 %v1045
    %1356 = vmatpush.bf16.msra.mxu0 %v1041
    %1357 = vmatmul.bf16.gmra.mxu0 %v133
    %v1358 = vpop.f32.mrf.mxu0
    %v1359 = vadd.f32 %v1346, %v1358
    %v1360 = vpop.f32.mrf.mxu0
    %1361 = vdwg.mxu0
    %1362 = vmatpush.bf16.msra.mxu0 %v1101
    %1363 = vmatpush.bf16.msra.mxu0 %v1097
    %1364 = vmatpush.bf16.msra.mxu0 %v1093
    %1365 = vmatpush.bf16.msra.mxu0 %v1089
    %1366 = vmatpush.bf16.msra.mxu0 %v1085
    %1367 = vmatpush.bf16.msra.mxu0 %v1081
    %1368 = vmatpush.bf16.msra.mxu0 %v1077
    %1369 = vmatpush.bf16.msra.mxu0 %v1073
    %1370 = vmatmul.bf16.gmra.mxu0 %v134
    %v1371 = vpop.f32.mrf.mxu0
    %v1372 = vadd.f32 %v1359, %v1371
    %v1373 = vpop.f32.mrf.mxu0
    %1374 = vdwg.mxu0
    %1375 = vmatpush.bf16.msra.mxu0 %v942
    %1376 = vmatpush.bf16.msra.mxu0 %v938
    %1377 = vmatpush.bf16.msra.mxu0 %v934
    %1378 = vmatpush.bf16.msra.mxu0 %v930
    %1379 = vmatpush.bf16.msra.mxu0 %v926
    %1380 = vmatpush.bf16.msra.mxu0 %v922
    %1381 = vmatpush.bf16.msra.mxu0 %v918
    %1382 = vmatpush.bf16.msra.mxu0 %v914
    %1383 = vmatmul.bf16.gmra.mxu0 %v129
    %v1384 = vpop.f32.mrf.mxu0
    %v1385 = vadd.f32 %v330, %v1384
    %v1386 = vpop.f32.mrf.mxu0
    %1387 = vdwg.mxu0
    %1388 = vmatpush.bf16.msra.mxu0 %v974
    %1389 = vmatpush.bf16.msra.mxu0 %v970
    %1390 = vmatpush.bf16.msra.mxu0 %v966
    %1391 = vmatpush.bf16.msra.mxu0 %v962
    %1392 = vmatpush.bf16.msra.mxu0 %v958
    %1393 = vmatpush.bf16.msra.mxu0 %v954
    %1394 = vmatpush.bf16.msra.mxu0 %v950
    %1395 = vmatpush.bf16.msra.mxu0 %v946
    %1396 = vmatmul.bf16.gmra.mxu0 %v130
    %v1397 = vpop.f32.mrf.mxu0
    %v1398 = vadd.f32 %v1385, %v1397
    %v1399 = vpop.f32.mrf.mxu0
    %1400 = vdwg.mxu0
    %1401 = vmatpush.bf16.msra.mxu0 %v1006
    %1402 = vmatpush.bf16.msra.mxu0 %v1002
    %1403 = vmatpush.bf16.msra.mxu0 %v998
    %1404 = vmatpush.bf16.msra.mxu0 %v994
    %1405 = vmatpush.bf16.msra.mxu0 %v990
    %1406 = vmatpush.bf16.msra.mxu0 %v986
    %1407 = vmatpush.bf16.msra.mxu0 %v982
    %1408 = vmatpush.bf16.msra.mxu0 %v978
    %1409 = vmatmul.bf16.gmra.mxu0 %v131
    %v1410 = vpop.f32.mrf.mxu0
    %v1411 = vadd.f32 %v1398, %v1410
    %v1412 = vpop.f32.mrf.mxu0
    %1413 = vdwg.mxu0
    %1414 = vmatpush.bf16.msra.mxu0 %v1038
    %1415 = vmatpush.bf16.msra.mxu0 %v1034
    %1416 = vmatpush.bf16.msra.mxu0 %v1030
    %1417 = vmatpush.bf16.msra.mxu0 %v1026
    %1418 = vmatpush.bf16.msra.mxu0 %v1022
    %1419 = vmatpush.bf16.msra.mxu0 %v1018
    %1420 = vmatpush.bf16.msra.mxu0 %v1014
    %1421 = vmatpush.bf16.msra.mxu0 %v1010
    %1422 = vmatmul.bf16.gmra.mxu0 %v132
    %v1423 = vpop.f32.mrf.mxu0
    %v1424 = vadd.f32 %v1411, %v1423
    %v1425 = vpop.f32.mrf.mxu0
    %1426 = vdwg.mxu0
    %1427 = vmatpush.bf16.msra.mxu0 %v1070
    %1428 = vmatpush.bf16.msra.mxu0 %v1066
    %1429 = vmatpush.bf16.msra.mxu0 %v1062
    %1430 = vmatpush.bf16.msra.mxu0 %v1058
    %1431 = vmatpush.bf16.msra.mxu0 %v1054
    %1432 = vmatpush.bf16.msra.mxu0 %v1050
    %1433 = vmatpush.bf16.msra.mxu0 %v1046
    %1434 = vmatpush.bf16.msra.mxu0 %v1042
    %1435 = vmatmul.bf16.gmra.mxu0 %v133
    %v1436 = vpop.f32.mrf.mxu0
    %v1437 = vadd.f32 %v1424, %v1436
    %v1438 = vpop.f32.mrf.mxu0
    %1439 = vdwg.mxu0
    %1440 = vmatpush.bf16.msra.mxu0 %v1102
    %1441 = vmatpush.bf16.msra.mxu0 %v1098
    %1442 = vmatpush.bf16.msra.mxu0 %v1094
    %1443 = vmatpush.bf16.msra.mxu0 %v1090
    %1444 = vmatpush.bf16.msra.mxu0 %v1086
    %1445 = vmatpush.bf16.msra.mxu0 %v1082
    %1446 = vmatpush.bf16.msra.mxu0 %v1078
    %1447 = vmatpush.bf16.msra.mxu0 %v1074
    %1448 = vmatmul.bf16.gmra.mxu0 %v134
    %v1449 = vpop.f32.mrf.mxu0
    %v1450 = vadd.f32 %v1437, %v1449
    %v1451 = vpop.f32.mrf.mxu0
    %1452 = vdwg.mxu0
    %1453 = vmatpush.bf16.msra.mxu0 %v943
    %1454 = vmatpush.bf16.msra.mxu0 %v939
    %1455 = vmatpush.bf16.msra.mxu0 %v935
    %1456 = vmatpush.bf16.msra.mxu0 %v931
    %1457 = vmatpush.bf16.msra.mxu0 %v927
    %1458 = vmatpush.bf16.msra.mxu0 %v923
    %1459 = vmatpush.bf16.msra.mxu0 %v919
    %1460 = vmatpush.bf16.msra.mxu0 %v915
    %1461 = vmatmul.bf16.gmra.mxu0 %v129
    %v1462 = vpop.f32.mrf.mxu0
    %v1463 = vadd.f32 %v331, %v1462
    %v1464 = vpop.f32.mrf.mxu0
    %1465 = vdwg.mxu0
    %1466 = vmatpush.bf16.msra.mxu0 %v975
    %1467 = vmatpush.bf16.msra.mxu0 %v971
    %1468 = vmatpush.bf16.msra.mxu0 %v967
    %1469 = vmatpush.bf16.msra.mxu0 %v963
    %1470 = vmatpush.bf16.msra.mxu0 %v959
    %1471 = vmatpush.bf16.msra.mxu0 %v955
    %1472 = vmatpush.bf16.msra.mxu0 %v951
    %1473 = vmatpush.bf16.msra.mxu0 %v947
    %1474 = vmatmul.bf16.gmra.mxu0 %v130
    %v1475 = vpop.f32.mrf.mxu0
    %v1476 = vadd.f32 %v1463, %v1475
    %v1477 = vpop.f32.mrf.mxu0
    %1478 = vdwg.mxu0
    %1479 = vmatpush.bf16.msra.mxu0 %v1007
    %1480 = vmatpush.bf16.msra.mxu0 %v1003
    %1481 = vmatpush.bf16.msra.mxu0 %v999
    %1482 = vmatpush.bf16.msra.mxu0 %v995
    %1483 = vmatpush.bf16.msra.mxu0 %v991
    %1484 = vmatpush.bf16.msra.mxu0 %v987
    %1485 = vmatpush.bf16.msra.mxu0 %v983
    %1486 = vmatpush.bf16.msra.mxu0 %v979
    %1487 = vmatmul.bf16.gmra.mxu0 %v131
    %v1488 = vpop.f32.mrf.mxu0
    %v1489 = vadd.f32 %v1476, %v1488
    %v1490 = vpop.f32.mrf.mxu0
    %1491 = vdwg.mxu0
    %1492 = vmatpush.bf16.msra.mxu0 %v1039
    %1493 = vmatpush.bf16.msra.mxu0 %v1035
    %1494 = vmatpush.bf16.msra.mxu0 %v1031
    %1495 = vmatpush.bf16.msra.mxu0 %v1027
    %1496 = vmatpush.bf16.msra.mxu0 %v1023
    %1497 = vmatpush.bf16.msra.mxu0 %v1019
    %1498 = vmatpush.bf16.msra.mxu0 %v1015
    %1499 = vmatpush.bf16.msra.mxu0 %v1011
    %1500 = vmatmul.bf16.gmra.mxu0 %v132
    %v1501 = vpop.f32.mrf.mxu0
    %v1502 = vadd.f32 %v1489, %v1501
    %v1503 = vpop.f32.mrf.mxu0
    %1504 = vdwg.mxu0
    %1505 = vmatpush.bf16.msra.mxu0 %v1071
    %1506 = vmatpush.bf16.msra.mxu0 %v1067
    %1507 = vmatpush.bf16.msra.mxu0 %v1063
    %1508 = vmatpush.bf16.msra.mxu0 %v1059
    %1509 = vmatpush.bf16.msra.mxu0 %v1055
    %1510 = vmatpush.bf16.msra.mxu0 %v1051
    %1511 = vmatpush.bf16.msra.mxu0 %v1047
    %1512 = vmatpush.bf16.msra.mxu0 %v1043
    %1513 = vmatmul.bf16.gmra.mxu0 %v133
    %v1514 = vpop.f32.mrf.mxu0
    %v1515 = vadd.f32 %v1502, %v1514
    %v1516 = vpop.f32.mrf.mxu0
    %1517 = vdwg.mxu0
    %1518 = vmatpush.bf16.msra.mxu0 %v1103
    %1519 = vmatpush.bf16.msra.mxu0 %v1099
    %1520 = vmatpush.bf16.msra.mxu0 %v1095
    %1521 = vmatpush.bf16.msra.mxu0 %v1091
    %1522 = vmatpush.bf16.msra.mxu0 %v1087
    %1523 = vmatpush.bf16.msra.mxu0 %v1083
    %1524 = vmatpush.bf16.msra.mxu0 %v1079
    %1525 = vmatpush.bf16.msra.mxu0 %v1075
    %1526 = vmatmul.bf16.gmra.mxu0 %v134
    %v1527 = vpop.f32.mrf.mxu0
    %v1528 = vadd.f32 %v1515, %v1527
    %v1529 = vpop.f32.mrf.mxu0
    %1530 = vdwg.mxu0
    %1531 = vmatpush.bf16.msra.mxu0 %v944
    %1532 = vmatpush.bf16.msra.mxu0 %v940
    %1533 = vmatpush.bf16.msra.mxu0 %v936
    %1534 = vmatpush.bf16.msra.mxu0 %v932
    %1535 = vmatpush.bf16.msra.mxu0 %v928
    %1536 = vmatpush.bf16.msra.mxu0 %v924
    %1537 = vmatpush.bf16.msra.mxu0 %v920
    %1538 = vmatpush.bf16.msra.mxu0 %v916
    %1539 = vmatmul.bf16.gmra.mxu0 %v129
    %v1540 = vpop.f32.mrf.mxu0
    %v1541 = vadd.f32 %v332, %v1540
    %v1542 = vpop.f32.mrf.mxu0
    %1543 = vdwg.mxu0
    %1544 = vmatpush.bf16.msra.mxu0 %v976
    %1545 = vmatpush.bf16.msra.mxu0 %v972
    %1546 = vmatpush.bf16.msra.mxu0 %v968
    %1547 = vmatpush.bf16.msra.mxu0 %v964
    %1548 = vmatpush.bf16.msra.mxu0 %v960
    %1549 = vmatpush.bf16.msra.mxu0 %v956
    %1550 = vmatpush.bf16.msra.mxu0 %v952
    %1551 = vmatpush.bf16.msra.mxu0 %v948
    %1552 = vmatmul.bf16.gmra.mxu0 %v130
    %v1553 = vpop.f32.mrf.mxu0
    %v1554 = vadd.f32 %v1541, %v1553
    %v1555 = vpop.f32.mrf.mxu0
    %1556 = vdwg.mxu0
    %1557 = vmatpush.bf16.msra.mxu0 %v1008
    %1558 = vmatpush.bf16.msra.mxu0 %v1004
    %1559 = vmatpush.bf16.msra.mxu0 %v1000
    %1560 = vmatpush.bf16.msra.mxu0 %v996
    %1561 = vmatpush.bf16.msra.mxu0 %v992
    %1562 = vmatpush.bf16.msra.mxu0 %v988
    %1563 = vmatpush.bf16.msra.mxu0 %v984
    %1564 = vmatpush.bf16.msra.mxu0 %v980
    %1565 = vmatmul.bf16.gmra.mxu0 %v131
    %v1566 = vpop.f32.mrf.mxu0
    %v1567 = vadd.f32 %v1554, %v1566
    %v1568 = vpop.f32.mrf.mxu0
    %1569 = vdwg.mxu0
    %1570 = vmatpush.bf16.msra.mxu0 %v1040
    %1571 = vmatpush.bf16.msra.mxu0 %v1036
    %1572 = vmatpush.bf16.msra.mxu0 %v1032
    %1573 = vmatpush.bf16.msra.mxu0 %v1028
    %1574 = vmatpush.bf16.msra.mxu0 %v1024
    %1575 = vmatpush.bf16.msra.mxu0 %v1020
    %1576 = vmatpush.bf16.msra.mxu0 %v1016
    %1577 = vmatpush.bf16.msra.mxu0 %v1012
    %1578 = vmatmul.bf16.gmra.mxu0 %v132
    %v1579 = vpop.f32.mrf.mxu0
    %v1580 = vadd.f32 %v1567, %v1579
    %v1581 = vpop.f32.mrf.mxu0
    %1582 = vdwg.mxu0
    %1583 = vmatpush.bf16.msra.mxu0 %v1072
    %1584 = vmatpush.bf16.msra.mxu0 %v1068
    %1585 = vmatpush.bf16.msra.mxu0 %v1064
    %1586 = vmatpush.bf16.msra.mxu0 %v1060
    %1587 = vmatpush.bf16.msra.mxu0 %v1056
    %1588 = vmatpush.bf16.msra.mxu0 %v1052
    %1589 = vmatpush.bf16.msra.mxu0 %v1048
    %1590 = vmatpush.bf16.msra.mxu0 %v1044
    %1591 = vmatmul.bf16.gmra.mxu0 %v133
    %v1592 = vpop.f32.mrf.mxu0
    %v1593 = vadd.f32 %v1580, %v1592
    %v1594 = vpop.f32.mrf.mxu0
    %1595 = vdwg.mxu0
    %1596 = vmatpush.bf16.msra.mxu0 %v1104
    %1597 = vmatpush.bf16.msra.mxu0 %v1100
    %1598 = vmatpush.bf16.msra.mxu0 %v1096
    %1599 = vmatpush.bf16.msra.mxu0 %v1092
    %1600 = vmatpush.bf16.msra.mxu0 %v1088
    %1601 = vmatpush.bf16.msra.mxu0 %v1084
    %1602 = vmatpush.bf16.msra.mxu0 %v1080
    %1603 = vmatpush.bf16.msra.mxu0 %v1076
    %1604 = vmatmul.bf16.gmra.mxu0 %v134
    %v1605 = vpop.f32.mrf.mxu0
    %v1606 = vadd.f32 %v1593, %v1605
    %v1607 = vpop.f32.mrf.mxu0
    %1608 = vdwg.mxu0
    %v1609 = vmax.f32 %v1372, 0.0
    %v1610 = vmax.f32 %v1450, 0.0
    %v1611 = vmax.f32 %v1528, 0.0
    %v1612 = vmax.f32 %v1606, 0.0
    %v1613 = vpack.c.bf16 %v1609, %v1609
    %v1614 = vpack.c.bf16 %v1610, %v1610
    %v1615 = vpack.c.bf16 %v1611, %v1611
    %v1616 = vpack.c.bf16 %v1612, %v1612
    %v1617 = vld [vmem:[#allocation8] sm:$0xff]
    %v1618 = vld [vmem:[#allocation8 + $0x8] sm:$0xff]
    %v1619 = vld [vmem:[#allocation8 + $0x10] sm:$0xff]
    %v1620 = vld [vmem:[#allocation8 + $0x18] sm:$0xff]
    %v1621 = vld [vmem:[#allocation8 + $0x20] sm:$0xff]
    %v1622 = vld [vmem:[#allocation8 + $0x28] sm:$0xff]
    %v1623 = vld [vmem:[#allocation8 + $0x30] sm:$0xff]
    %v1624 = vld [vmem:[#allocation8 + $0x38] sm:$0xff]
    %v1625 = vld [vmem:[#allocation8 + $0x40] sm:$0xff]
    %v1626 = vld [vmem:[#allocation8 + $0x48] sm:$0xff]
    %v1627 = vld [vmem:[#allocation8 + $0x50] sm:$0xff]
    %v1628 = vld [vmem:[#allocation8 + $0x58] sm:$0xff]
    %v1629 = vld [vmem:[#allocation8 + $0x60] sm:$0xff]
    %v1630 = vld [vmem:[#allocation8 + $0x68] sm:$0xff]
    %v1631 = vld [vmem:[#allocation8 + $0x70] sm:$0xff]
    %v1632 = vld [vmem:[#allocation8 + $0x78] sm:$0xff]
    %v1633 = vld [vmem:[#allocation8 + $0x80] sm:$0xff]
    %v1634 = vld [vmem:[#allocation8 + $0x88] sm:$0xff]
    %v1635 = vld [vmem:[#allocation8 + $0x90] sm:$0xff]
    %v1636 = vld [vmem:[#allocation8 + $0x98] sm:$0xff]
    %v1637 = vld [vmem:[#allocation8 + $0xa0] sm:$0xff]
    %v1638 = vld [vmem:[#allocation8 + $0xa8] sm:$0xff]
    %v1639 = vld [vmem:[#allocation8 + $0xb0] sm:$0xff]
    %v1640 = vld [vmem:[#allocation8 + $0xb8] sm:$0xff]
    %v1641 = vld [vmem:[#allocation8 + $0xc0] sm:$0xff]
    %v1642 = vld [vmem:[#allocation8 + $0xc8] sm:$0xff]
    %v1643 = vld [vmem:[#allocation8 + $0xd0] sm:$0xff]
    %v1644 = vld [vmem:[#allocation8 + $0xd8] sm:$0xff]
    %v1645 = vld [vmem:[#allocation8 + $0xe0] sm:$0xff]
    %v1646 = vld [vmem:[#allocation8 + $0xe8] sm:$0xff]
    %v1647 = vld [vmem:[#allocation8 + $0xf0] sm:$0xff]
    %v1648 = vld [vmem:[#allocation8 + $0xf8] sm:$0xff]
    %v1649 = vld [vmem:[#allocation8 + $0x100] sm:$0xff]
    %v1650 = vld [vmem:[#allocation8 + $0x108] sm:$0xff]
    %v1651 = vld [vmem:[#allocation8 + $0x110] sm:$0xff]
    %v1652 = vld [vmem:[#allocation8 + $0x118] sm:$0xff]
    %v1653 = vld [vmem:[#allocation8 + $0x120] sm:$0xff]
    %v1654 = vld [vmem:[#allocation8 + $0x128] sm:$0xff]
    %v1655 = vld [vmem:[#allocation8 + $0x130] sm:$0xff]
    %v1656 = vld [vmem:[#allocation8 + $0x138] sm:$0xff]
    %v1657 = vld [vmem:[#allocation8 + $0x140] sm:$0xff]
    %v1658 = vld [vmem:[#allocation8 + $0x148] sm:$0xff]
    %v1659 = vld [vmem:[#allocation8 + $0x150] sm:$0xff]
    %v1660 = vld [vmem:[#allocation8 + $0x158] sm:$0xff]
    %v1661 = vld [vmem:[#allocation8 + $0x160] sm:$0xff]
    %v1662 = vld [vmem:[#allocation8 + $0x168] sm:$0xff]
    %v1663 = vld [vmem:[#allocation8 + $0x170] sm:$0xff]
    %v1664 = vld [vmem:[#allocation8 + $0x178] sm:$0xff]
    %v1665 = vld [vmem:[#allocation8 + $0x180] sm:$0xff]
    %v1666 = vld [vmem:[#allocation8 + $0x188] sm:$0xff]
    %v1667 = vld [vmem:[#allocation8 + $0x190] sm:$0xff]
    %v1668 = vld [vmem:[#allocation8 + $0x198] sm:$0xff]
    %v1669 = vld [vmem:[#allocation8 + $0x1a0] sm:$0xff]
    %v1670 = vld [vmem:[#allocation8 + $0x1a8] sm:$0xff]
    %v1671 = vld [vmem:[#allocation8 + $0x1b0] sm:$0xff]
    %v1672 = vld [vmem:[#allocation8 + $0x1b8] sm:$0xff]
    %v1673 = vld [vmem:[#allocation8 + $0x1c0] sm:$0xff]
    %v1674 = vld [vmem:[#allocation8 + $0x1c8] sm:$0xff]
    %v1675 = vld [vmem:[#allocation8 + $0x1d0] sm:$0xff]
    %v1676 = vld [vmem:[#allocation8 + $0x1d8] sm:$0xff]
    %v1677 = vld [vmem:[#allocation8 + $0x1e0] sm:$0xff]
    %v1678 = vld [vmem:[#allocation8 + $0x1e8] sm:$0xff]
    %v1679 = vld [vmem:[#allocation8 + $0x1f0] sm:$0xff]
    %v1680 = vld [vmem:[#allocation8 + $0x1f8] sm:$0xff]
    %v1681 = vld [vmem:[%s4] sm:$0x3]
    %v1683 = vperm.slane %v1681, 0
    %v1684 = vperm.slane %v1681, 1
    %v1751 = vunpack.c.l.b16 %v1617
    %v1752 = vunpack.c.h.b16 %v1617
    %v1753 = vunpack.c.l.b16 %v1618
    %v1754 = vunpack.c.h.b16 %v1618
    %v1755 = vunpack.c.l.b16 %v1619
    %v1756 = vunpack.c.h.b16 %v1619
    %v1757 = vunpack.c.l.b16 %v1620
    %v1758 = vunpack.c.h.b16 %v1620
    %v1759 = vunpack.c.l.b16 %v1621
    %v1760 = vunpack.c.h.b16 %v1621
    %v1761 = vunpack.c.l.b16 %v1622
    %v1762 = vunpack.c.h.b16 %v1622
    %v1763 = vunpack.c.l.b16 %v1623
    %v1764 = vunpack.c.h.b16 %v1623
    %v1765 = vunpack.c.l.b16 %v1624
    %v1766 = vunpack.c.h.b16 %v1624
    %v1767 = vunpack.c.l.b16 %v1625
    %v1768 = vunpack.c.h.b16 %v1625
    %v1769 = vunpack.c.l.b16 %v1626
    %v1770 = vunpack.c.h.b16 %v1626
    %v1771 = vunpack.c.l.b16 %v1627
    %v1772 = vunpack.c.h.b16 %v1627
    %v1773 = vunpack.c.l.b16 %v1628
    %v1774 = vunpack.c.h.b16 %v1628
    %v1775 = vunpack.c.l.b16 %v1629
    %v1776 = vunpack.c.h.b16 %v1629
    %v1777 = vunpack.c.l.b16 %v1630
    %v1778 = vunpack.c.h.b16 %v1630
    %v1779 = vunpack.c.l.b16 %v1631
    %v1780 = vunpack.c.h.b16 %v1631
    %v1781 = vunpack.c.l.b16 %v1632
    %v1782 = vunpack.c.h.b16 %v1632
    %v1783 = vunpack.c.l.b16 %v1633
    %v1784 = vunpack.c.h.b16 %v1633
    %v1785 = vunpack.c.l.b16 %v1634
    %v1786 = vunpack.c.h.b16 %v1634
    %v1787 = vunpack.c.l.b16 %v1635
    %v1788 = vunpack.c.h.b16 %v1635
    %v1789 = vunpack.c.l.b16 %v1636
    %v1790 = vunpack.c.h.b16 %v1636
    %v1791 = vunpack.c.l.b16 %v1637
    %v1792 = vunpack.c.h.b16 %v1637
    %v1793 = vunpack.c.l.b16 %v1638
    %v1794 = vunpack.c.h.b16 %v1638
    %v1795 = vunpack.c.l.b16 %v1639
    %v1796 = vunpack.c.h.b16 %v1639
    %v1797 = vunpack.c.l.b16 %v1640
    %v1798 = vunpack.c.h.b16 %v1640
    %v1799 = vunpack.c.l.b16 %v1641
    %v1800 = vunpack.c.h.b16 %v1641
    %v1801 = vunpack.c.l.b16 %v1642
    %v1802 = vunpack.c.h.b16 %v1642
    %v1803 = vunpack.c.l.b16 %v1643
    %v1804 = vunpack.c.h.b16 %v1643
    %v1805 = vunpack.c.l.b16 %v1644
    %v1806 = vunpack.c.h.b16 %v1644
    %v1807 = vunpack.c.l.b16 %v1645
    %v1808 = vunpack.c.h.b16 %v1645
    %v1809 = vunpack.c.l.b16 %v1646
    %v1810 = vunpack.c.h.b16 %v1646
    %v1811 = vunpack.c.l.b16 %v1647
    %v1812 = vunpack.c.h.b16 %v1647
    %v1813 = vunpack.c.l.b16 %v1648
    %v1814 = vunpack.c.h.b16 %v1648
    %v1815 = vunpack.c.l.b16 %v1649
    %v1816 = vunpack.c.h.b16 %v1649
    %v1817 = vunpack.c.l.b16 %v1650
    %v1818 = vunpack.c.h.b16 %v1650
    %v1819 = vunpack.c.l.b16 %v1651
    %v1820 = vunpack.c.h.b16 %v1651
    %v1821 = vunpack.c.l.b16 %v1652
    %v1822 = vunpack.c.h.b16 %v1652
    %v1823 = vunpack.c.l.b16 %v1653
    %v1824 = vunpack.c.h.b16 %v1653
    %v1825 = vunpack.c.l.b16 %v1654
    %v1826 = vunpack.c.h.b16 %v1654
    %v1827 = vunpack.c.l.b16 %v1655
    %v1828 = vunpack.c.h.b16 %v1655
    %v1829 = vunpack.c.l.b16 %v1656
    %v1830 = vunpack.c.h.b16 %v1656
    %v1831 = vunpack.c.l.b16 %v1657
    %v1832 = vunpack.c.h.b16 %v1657
    %v1833 = vunpack.c.l.b16 %v1658
    %v1834 = vunpack.c.h.b16 %v1658
    %v1835 = vunpack.c.l.b16 %v1659
    %v1836 = vunpack.c.h.b16 %v1659
    %v1837 = vunpack.c.l.b16 %v1660
    %v1838 = vunpack.c.h.b16 %v1660
    %v1839 = vunpack.c.l.b16 %v1661
    %v1840 = vunpack.c.h.b16 %v1661
    %v1841 = vunpack.c.l.b16 %v1662
    %v1842 = vunpack.c.h.b16 %v1662
    %v1843 = vunpack.c.l.b16 %v1663
    %v1844 = vunpack.c.h.b16 %v1663
    %v1845 = vunpack.c.l.b16 %v1664
    %v1846 = vunpack.c.h.b16 %v1664
    %v1847 = vunpack.c.l.b16 %v1665
    %v1848 = vunpack.c.h.b16 %v1665
    %v1849 = vunpack.c.l.b16 %v1666
    %v1850 = vunpack.c.h.b16 %v1666
    %v1851 = vunpack.c.l.b16 %v1667
    %v1852 = vunpack.c.h.b16 %v1667
    %v1853 = vunpack.c.l.b16 %v1668
    %v1854 = vunpack.c.h.b16 %v1668
    %v1855 = vunpack.c.l.b16 %v1669
    %v1856 = vunpack.c.h.b16 %v1669
    %v1857 = vunpack.c.l.b16 %v1670
    %v1858 = vunpack.c.h.b16 %v1670
    %v1859 = vunpack.c.l.b16 %v1671
    %v1860 = vunpack.c.h.b16 %v1671
    %v1861 = vunpack.c.l.b16 %v1672
    %v1862 = vunpack.c.h.b16 %v1672
    %v1863 = vunpack.c.l.b16 %v1673
    %v1864 = vunpack.c.h.b16 %v1673
    %v1865 = vunpack.c.l.b16 %v1674
    %v1866 = vunpack.c.h.b16 %v1674
    %v1867 = vunpack.c.l.b16 %v1675
    %v1868 = vunpack.c.h.b16 %v1675
    %v1869 = vunpack.c.l.b16 %v1676
    %v1870 = vunpack.c.h.b16 %v1676
    %v1871 = vunpack.c.l.b16 %v1677
    %v1872 = vunpack.c.h.b16 %v1677
    %v1873 = vunpack.c.l.b16 %v1678
    %v1874 = vunpack.c.h.b16 %v1678
    %v1875 = vunpack.c.l.b16 %v1679
    %v1876 = vunpack.c.h.b16 %v1679
    %v1877 = vunpack.c.l.b16 %v1680
    %v1878 = vunpack.c.h.b16 %v1680
    %v1879 = vpack.c.b16 %v1753, %v1751
    %v1880 = vpack.c.b16 %v1754, %v1752
    %v1881 = vpack.c.b16 %v1757, %v1755
    %v1882 = vpack.c.b16 %v1758, %v1756
    %v1883 = vpack.c.b16 %v1761, %v1759
    %v1884 = vpack.c.b16 %v1762, %v1760
    %v1885 = vpack.c.b16 %v1765, %v1763
    %v1886 = vpack.c.b16 %v1766, %v1764
    %v1887 = vpack.c.b16 %v1769, %v1767
    %v1888 = vpack.c.b16 %v1770, %v1768
    %v1889 = vpack.c.b16 %v1773, %v1771
    %v1890 = vpack.c.b16 %v1774, %v1772
    %v1891 = vpack.c.b16 %v1777, %v1775
    %v1892 = vpack.c.b16 %v1778, %v1776
    %v1893 = vpack.c.b16 %v1781, %v1779
    %v1894 = vpack.c.b16 %v1782, %v1780
    %v1895 = vpack.c.b16 %v1785, %v1783
    %v1896 = vpack.c.b16 %v1786, %v1784
    %v1897 = vpack.c.b16 %v1789, %v1787
    %v1898 = vpack.c.b16 %v1790, %v1788
    %v1899 = vpack.c.b16 %v1793, %v1791
    %v1900 = vpack.c.b16 %v1794, %v1792
    %v1901 = vpack.c.b16 %v1797, %v1795
    %v1902 = vpack.c.b16 %v1798, %v1796
    %v1903 = vpack.c.b16 %v1801, %v1799
    %v1904 = vpack.c.b16 %v1802, %v1800
    %v1905 = vpack.c.b16 %v1805, %v1803
    %v1906 = vpack.c.b16 %v1806, %v1804
    %v1907 = vpack.c.b16 %v1809, %v1807
    %v1908 = vpack.c.b16 %v1810, %v1808
    %v1909 = vpack.c.b16 %v1813, %v1811
    %v1910 = vpack.c.b16 %v1814, %v1812
    %v1911 = vpack.c.b16 %v1817, %v1815
    %v1912 = vpack.c.b16 %v1818, %v1816
    %v1913 = vpack.c.b16 %v1821, %v1819
    %v1914 = vpack.c.b16 %v1822, %v1820
    %v1915 = vpack.c.b16 %v1825, %v1823
    %v1916 = vpack.c.b16 %v1826, %v1824
    %v1917 = vpack.c.b16 %v1829, %v1827
    %v1918 = vpack.c.b16 %v1830, %v1828
    %v1919 = vpack.c.b16 %v1833, %v1831
    %v1920 = vpack.c.b16 %v1834, %v1832
    %v1921 = vpack.c.b16 %v1837, %v1835
    %v1922 = vpack.c.b16 %v1838, %v1836
    %v1923 = vpack.c.b16 %v1841, %v1839
    %v1924 = vpack.c.b16 %v1842, %v1840
    %v1925 = vpack.c.b16 %v1845, %v1843
    %v1926 = vpack.c.b16 %v1846, %v1844
    %v1927 = vpack.c.b16 %v1849, %v1847
    %v1928 = vpack.c.b16 %v1850, %v1848
    %v1929 = vpack.c.b16 %v1853, %v1851
    %v1930 = vpack.c.b16 %v1854, %v1852
    %v1931 = vpack.c.b16 %v1857, %v1855
    %v1932 = vpack.c.b16 %v1858, %v1856
    %v1933 = vpack.c.b16 %v1861, %v1859
    %v1934 = vpack.c.b16 %v1862, %v1860
    %v1935 = vpack.c.b16 %v1865, %v1863
    %v1936 = vpack.c.b16 %v1866, %v1864
    %v1937 = vpack.c.b16 %v1869, %v1867
    %v1938 = vpack.c.b16 %v1870, %v1868
    %v1939 = vpack.c.b16 %v1873, %v1871
    %v1940 = vpack.c.b16 %v1874, %v1872
    %v1941 = vpack.c.b16 %v1877, %v1875
    %v1942 = vpack.c.b16 %v1878, %v1876
    %2007 = vmatpush.bf16.msra.mxu0 %v1893
    %2008 = vmatpush.bf16.msra.mxu0 %v1891
    %2009 = vmatpush.bf16.msra.mxu0 %v1889
    %2010 = vmatpush.bf16.msra.mxu0 %v1887
    %2011 = vmatpush.bf16.msra.mxu0 %v1885
    %2012 = vmatpush.bf16.msra.mxu0 %v1883
    %2013 = vmatpush.bf16.msra.mxu0 %v1881
    %2014 = vmatpush.bf16.msra.mxu0 %v1879
    %2015 = vmatmul.bf16.gmra.mxu0 %v1613
    %v2016 = vpop.f32.mrf.mxu0
    %v2017 = vadd.f32 %v1683, %v2016
    %v2018 = vpop.f32.mrf.mxu0
    %2019 = vdwg.mxu0
    %2020 = vmatpush.bf16.msra.mxu0 %v1909
    %2021 = vmatpush.bf16.msra.mxu0 %v1907
    %2022 = vmatpush.bf16.msra.mxu0 %v1905
    %2023 = vmatpush.bf16.msra.mxu0 %v1903
    %2024 = vmatpush.bf16.msra.mxu0 %v1901
    %2025 = vmatpush.bf16.msra.mxu0 %v1899
    %2026 = vmatpush.bf16.msra.mxu0 %v1897
    %2027 = vmatpush.bf16.msra.mxu0 %v1895
    %2028 = vmatmul.bf16.gmra.mxu0 %v1614
    %v2029 = vpop.f32.mrf.mxu0
    %v2030 = vadd.f32 %v2017, %v2029
    %v2031 = vpop.f32.mrf.mxu0
    %2032 = vdwg.mxu0
    %2033 = vmatpush.bf16.msra.mxu0 %v1925
    %2034 = vmatpush.bf16.msra.mxu0 %v1923
    %2035 = vmatpush.bf16.msra.mxu0 %v1921
    %2036 = vmatpush.bf16.msra.mxu0 %v1919
    %2037 = vmatpush.bf16.msra.mxu0 %v1917
    %2038 = vmatpush.bf16.msra.mxu0 %v1915
    %2039 = vmatpush.bf16.msra.mxu0 %v1913
    %2040 = vmatpush.bf16.msra.mxu0 %v1911
    %2041 = vmatmul.bf16.gmra.mxu0 %v1615
    %v2042 = vpop.f32.mrf.mxu0
    %v2043 = vadd.f32 %v2030, %v2042
    %v2044 = vpop.f32.mrf.mxu0
    %2045 = vdwg.mxu0
    %2046 = vmatpush.bf16.msra.mxu0 %v1941
    %2047 = vmatpush.bf16.msra.mxu0 %v1939
    %2048 = vmatpush.bf16.msra.mxu0 %v1937
    %2049 = vmatpush.bf16.msra.mxu0 %v1935
    %2050 = vmatpush.bf16.msra.mxu0 %v1933
    %2051 = vmatpush.bf16.msra.mxu0 %v1931
    %2052 = vmatpush.bf16.msra.mxu0 %v1929
    %2053 = vmatpush.bf16.msra.mxu0 %v1927
    %2054 = vmatmul.bf16.gmra.mxu0 %v1616
    %v2055 = vpop.f32.mrf.mxu0
    %v2056 = vadd.f32 %v2043, %v2055
    %v2057 = vpop.f32.mrf.mxu0
    %2058 = vdwg.mxu0
    %2059 = vmatpush.bf16.msra.mxu0 %v1894
    %2060 = vmatpush.bf16.msra.mxu0 %v1892
    %2061 = vmatpush.bf16.msra.mxu0 %v1890
    %2062 = vmatpush.bf16.msra.mxu0 %v1888
    %2063 = vmatpush.bf16.msra.mxu0 %v1886
    %2064 = vmatpush.bf16.msra.mxu0 %v1884
    %2065 = vmatpush.bf16.msra.mxu0 %v1882
    %2066 = vmatpush.bf16.msra.mxu0 %v1880
    %2067 = vmatmul.bf16.gmra.mxu0 %v1613
    %v2068 = vpop.f32.mrf.mxu0
    %v2069 = vadd.f32 %v1684, %v2068
    %v2070 = vpop.f32.mrf.mxu0
    %2071 = vdwg.mxu0
    %2072 = vmatpush.bf16.msra.mxu0 %v1910
    %2073 = vmatpush.bf16.msra.mxu0 %v1908
    %2074 = vmatpush.bf16.msra.mxu0 %v1906
    %2075 = vmatpush.bf16.msra.mxu0 %v1904
    %2076 = vmatpush.bf16.msra.mxu0 %v1902
    %2077 = vmatpush.bf16.msra.mxu0 %v1900
    %2078 = vmatpush.bf16.msra.mxu0 %v1898
    %2079 = vmatpush.bf16.msra.mxu0 %v1896
    %2080 = vmatmul.bf16.gmra.mxu0 %v1614
    %v2081 = vpop.f32.mrf.mxu0
    %v2082 = vadd.f32 %v2069, %v2081
    %v2083 = vpop.f32.mrf.mxu0
    %2084 = vdwg.mxu0
    %2085 = vmatpush.bf16.msra.mxu0 %v1926
    %2086 = vmatpush.bf16.msra.mxu0 %v1924
    %2087 = vmatpush.bf16.msra.mxu0 %v1922
    %2088 = vmatpush.bf16.msra.mxu0 %v1920
    %2089 = vmatpush.bf16.msra.mxu0 %v1918
    %2090 = vmatpush.bf16.msra.mxu0 %v1916
    %2091 = vmatpush.bf16.msra.mxu0 %v1914
    %2092 = vmatpush.bf16.msra.mxu0 %v1912
    %2093 = vmatmul.bf16.gmra.mxu0 %v1615
    %v2094 = vpop.f32.mrf.mxu0
    %v2095 = vadd.f32 %v2082, %v2094
    %v2096 = vpop.f32.mrf.mxu0
    %2097 = vdwg.mxu0
    %2098 = vmatpush.bf16.msra.mxu0 %v1942
    %2099 = vmatpush.bf16.msra.mxu0 %v1940
    %2100 = vmatpush.bf16.msra.mxu0 %v1938
    %2101 = vmatpush.bf16.msra.mxu0 %v1936
    %2102 = vmatpush.bf16.msra.mxu0 %v1934
    %2103 = vmatpush.bf16.msra.mxu0 %v1932
    %2104 = vmatpush.bf16.msra.mxu0 %v1930
    %2105 = vmatpush.bf16.msra.mxu0 %v1928
    %2106 = vmatmul.bf16.gmra.mxu0 %v1616
    %v2107 = vpop.f32.mrf.mxu0
    %v2108 = vadd.f32 %v2095, %v2107
    %v2109 = vpop.f32.mrf.mxu0
    %2110 = vdwg.mxu0
    %v2111 = vmax.f32 %v2056, 0.0
    %v2112 = vmax.f32 %v2108, 0.0
    %v2113 = vpack.c.bf16 %v2111, %v2111
    %v2114 = vpack.c.bf16 %v2112, %v2112
    %v2115 = vld [vmem:[#allocation10] sm:$0xf]
    %v2116 = vld [vmem:[#allocation10 + $0x4] sm:$0xf]
    %v2117 = vld [vmem:[#allocation10 + $0x8] sm:$0xf]
    %v2118 = vld [vmem:[#allocation10 + $0xc] sm:$0xf]
    %v2119 = vld [vmem:[#allocation10 + $0x10] sm:$0xf]
    %v2120 = vld [vmem:[#allocation10 + $0x14] sm:$0xf]
    %v2121 = vld [vmem:[#allocation10 + $0x18] sm:$0xf]
    %v2122 = vld [vmem:[#allocation10 + $0x1c] sm:$0xf]
    %v2123 = vld [vmem:[#allocation10 + $0x20] sm:$0xf]
    %v2124 = vld [vmem:[#allocation10 + $0x24] sm:$0xf]
    %v2125 = vld [vmem:[#allocation10 + $0x28] sm:$0xf]
    %v2126 = vld [vmem:[#allocation10 + $0x2c] sm:$0xf]
    %v2127 = vld [vmem:[#allocation10 + $0x30] sm:$0xf]
    %v2128 = vld [vmem:[#allocation10 + $0x34] sm:$0xf]
    %v2129 = vld [vmem:[#allocation10 + $0x38] sm:$0xf]
    %v2130 = vld [vmem:[#allocation10 + $0x3c] sm:$0xf]
    %v2131 = vld [vmem:[#allocation10 + $0x40] sm:$0xf]
    %v2132 = vld [vmem:[#allocation10 + $0x44] sm:$0xf]
    %v2133 = vld [vmem:[#allocation10 + $0x48] sm:$0xf]
    %v2134 = vld [vmem:[#allocation10 + $0x4c] sm:$0xf]
    %v2135 = vld [vmem:[#allocation10 + $0x50] sm:$0xf]
    %v2136 = vld [vmem:[#allocation10 + $0x54] sm:$0xf]
    %v2137 = vld [vmem:[#allocation10 + $0x58] sm:$0xf]
    %v2138 = vld [vmem:[#allocation10 + $0x5c] sm:$0xf]
    %v2139 = vld [vmem:[#allocation10 + $0x60] sm:$0xf]
    %v2140 = vld [vmem:[#allocation10 + $0x64] sm:$0xf]
    %v2141 = vld [vmem:[#allocation10 + $0x68] sm:$0xf]
    %v2142 = vld [vmem:[#allocation10 + $0x6c] sm:$0xf]
    %v2143 = vld [vmem:[#allocation10 + $0x70] sm:$0xf]
    %v2144 = vld [vmem:[#allocation10 + $0x74] sm:$0xf]
    %v2145 = vld [vmem:[#allocation10 + $0x78] sm:$0xf]
    %v2146 = vld [vmem:[#allocation10 + $0x7c] sm:$0xf]
    %v2147 = vld [vmem:[%s6] sm:$0x1]
    %v2149 = vperm.slane %v2147, 0
    %v2183 = vunpack.c.l.b16 %v2115
    %v2184 = vunpack.c.l.b16 %v2116
    %v2185 = vunpack.c.l.b16 %v2117
    %v2186 = vunpack.c.l.b16 %v2118
    %v2187 = vunpack.c.l.b16 %v2119
    %v2188 = vunpack.c.l.b16 %v2120
    %v2189 = vunpack.c.l.b16 %v2121
    %v2190 = vunpack.c.l.b16 %v2122
    %v2191 = vunpack.c.l.b16 %v2123
    %v2192 = vunpack.c.l.b16 %v2124
    %v2193 = vunpack.c.l.b16 %v2125
    %v2194 = vunpack.c.l.b16 %v2126
    %v2195 = vunpack.c.l.b16 %v2127
    %v2196 = vunpack.c.l.b16 %v2128
    %v2197 = vunpack.c.l.b16 %v2129
    %v2198 = vunpack.c.l.b16 %v2130
    %v2199 = vunpack.c.l.b16 %v2131
    %v2200 = vunpack.c.l.b16 %v2132
    %v2201 = vunpack.c.l.b16 %v2133
    %v2202 = vunpack.c.l.b16 %v2134
    %v2203 = vunpack.c.l.b16 %v2135
    %v2204 = vunpack.c.l.b16 %v2136
    %v2205 = vunpack.c.l.b16 %v2137
    %v2206 = vunpack.c.l.b16 %v2138
    %v2207 = vunpack.c.l.b16 %v2139
    %v2208 = vunpack.c.l.b16 %v2140
    %v2209 = vunpack.c.l.b16 %v2141
    %v2210 = vunpack.c.l.b16 %v2142
    %v2211 = vunpack.c.l.b16 %v2143
    %v2212 = vunpack.c.l.b16 %v2144
    %v2213 = vunpack.c.l.b16 %v2145
    %v2214 = vunpack.c.l.b16 %v2146
    %v2215 = vpack.c.b16 %v2184, %v2183
    %v2216 = vpack.c.b16 %v2186, %v2185
    %v2217 = vpack.c.b16 %v2188, %v2187
    %v2218 = vpack.c.b16 %v2190, %v2189
    %v2219 = vpack.c.b16 %v2192, %v2191
    %v2220 = vpack.c.b16 %v2194, %v2193
    %v2221 = vpack.c.b16 %v2196, %v2195
    %v2222 = vpack.c.b16 %v2198, %v2197
    %v2223 = vpack.c.b16 %v2200, %v2199
    %v2224 = vpack.c.b16 %v2202, %v2201
    %v2225 = vpack.c.b16 %v2204, %v2203
    %v2226 = vpack.c.b16 %v2206, %v2205
    %v2227 = vpack.c.b16 %v2208, %v2207
    %v2228 = vpack.c.b16 %v2210, %v2209
    %v2229 = vpack.c.b16 %v2212, %v2211
    %v2230 = vpack.c.b16 %v2214, %v2213
    %2247 = vmatpush.bf16.msra.mxu0 %v2222
    %2248 = vmatpush.bf16.msra.mxu0 %v2221
    %2249 = vmatpush.bf16.msra.mxu0 %v2220
    %2250 = vmatpush.bf16.msra.mxu0 %v2219
    %2251 = vmatpush.bf16.msra.mxu0 %v2218
    %2252 = vmatpush.bf16.msra.mxu0 %v2217
    %2253 = vmatpush.bf16.msra.mxu0 %v2216
    %2254 = vmatpush.bf16.msra.mxu0 %v2215
    %2255 = vmatmul.bf16.gmra.mxu0 %v2113
    %v2256 = vpop.f32.mrf.mxu0
    %v2257 = vadd.f32 %v2149, %v2256
    %v2258 = vpop.f32.mrf.mxu0
    %2259 = vdwg.mxu0
    %2260 = vmatpush.bf16.msra.mxu0 %v2230
    %2261 = vmatpush.bf16.msra.mxu0 %v2229
    %2262 = vmatpush.bf16.msra.mxu0 %v2228
    %2263 = vmatpush.bf16.msra.mxu0 %v2227
    %2264 = vmatpush.bf16.msra.mxu0 %v2226
    %2265 = vmatpush.bf16.msra.mxu0 %v2225
    %2266 = vmatpush.bf16.msra.mxu0 %v2224
    %2267 = vmatpush.bf16.msra.mxu0 %v2223
    %2268 = vmatmul.bf16.gmra.mxu0 %v2114
    %v2269 = vpop.f32.mrf.mxu0
    %v2270 = vadd.f32 %v2257, %v2269
    %v2271 = vpop.f32.mrf.mxu0
    %2272 = vdwg.mxu0
    %v2273 = vmax.f32 %v2270, 0.0
    %v2274 = vpack.c.bf16 %v2273, %v2273
    %v2275 = vld [vmem:[#allocation11] sm:$0xf]
    %v2276 = vld [vmem:[#allocation11 + $0x4] sm:$0xf]
    %v2277 = vld [vmem:[#allocation11 + $0x8] sm:$0xf]
    %v2278 = vld [vmem:[#allocation11 + $0xc] sm:$0xf]
    %v2279 = vld [vmem:[#allocation11 + $0x10] sm:$0xf]
    %v2280 = vld [vmem:[#allocation11 + $0x14] sm:$0xf]
    %v2281 = vld [vmem:[#allocation11 + $0x18] sm:$0xf]
    %v2282 = vld [vmem:[#allocation11 + $0x1c] sm:$0xf]
    %v2283 = vld [vmem:[#allocation11 + $0x20] sm:$0xf]
    %v2284 = vld [vmem:[#allocation11 + $0x24] sm:$0xf]
    %v2285 = vld [vmem:[#allocation11 + $0x28] sm:$0xf]
    %v2286 = vld [vmem:[#allocation11 + $0x2c] sm:$0xf]
    %v2287 = vld [vmem:[#allocation11 + $0x30] sm:$0xf]
    %v2288 = vld [vmem:[#allocation11 + $0x34] sm:$0xf]
    %v2289 = vld [vmem:[#allocation11 + $0x38] sm:$0xf]
    %v2290 = vld [vmem:[#allocation11 + $0x3c] sm:$0xf]
    %v2291 = vld [vmem:[%s8] sm:$0x1]
    %v2293 = vperm.slane %v2291, 0
    %v2311 = vunpack.c.l.b16 %v2275
    %v2312 = vunpack.c.l.b16 %v2276
    %v2313 = vunpack.c.l.b16 %v2277
    %v2314 = vunpack.c.l.b16 %v2278
    %v2315 = vunpack.c.l.b16 %v2279
    %v2316 = vunpack.c.l.b16 %v2280
    %v2317 = vunpack.c.l.b16 %v2281
    %v2318 = vunpack.c.l.b16 %v2282
    %v2319 = vunpack.c.l.b16 %v2283
    %v2320 = vunpack.c.l.b16 %v2284
    %v2321 = vunpack.c.l.b16 %v2285
    %v2322 = vunpack.c.l.b16 %v2286
    %v2323 = vunpack.c.l.b16 %v2287
    %v2324 = vunpack.c.l.b16 %v2288
    %v2325 = vunpack.c.l.b16 %v2289
    %v2326 = vunpack.c.l.b16 %v2290
    %v2327 = vpack.c.b16 %v2312, %v2311
    %v2328 = vpack.c.b16 %v2314, %v2313
    %v2329 = vpack.c.b16 %v2316, %v2315
    %v2330 = vpack.c.b16 %v2318, %v2317
    %v2331 = vpack.c.b16 %v2320, %v2319
    %v2332 = vpack.c.b16 %v2322, %v2321
    %v2333 = vpack.c.b16 %v2324, %v2323
    %v2334 = vpack.c.b16 %v2326, %v2325
    %2343 = vmatpush.bf16.msra.mxu0 %v2334
    %2344 = vmatpush.bf16.msra.mxu0 %v2333
    %2345 = vmatpush.bf16.msra.mxu0 %v2332
    %2346 = vmatpush.bf16.msra.mxu0 %v2331
    %2347 = vmatpush.bf16.msra.mxu0 %v2330
    %2348 = vmatpush.bf16.msra.mxu0 %v2329
    %2349 = vmatpush.bf16.msra.mxu0 %v2328
    %2350 = vmatpush.bf16.msra.mxu0 %v2327
    %2351 = vmatmul.bf16.gmra.mxu0 %v2274
    %v2352 = vpop.f32.mrf.mxu0
    %v2353 = vadd.f32 %v2293, %v2352
    %v2354 = vpop.f32.mrf.mxu0
    %2355 = vdwg.mxu0
    %v2356 = vpack.c.bf16 %v2353, %v2353
    %2357 = vst [vmem:[#allocation13] sm:$0xf] %v2356
    // Predicated region
    $region62: #{tpu_custom_call.1} parent=1 // pred_check
      _
    $region63: #{tpu_custom_call.1} parent=1 // pred_check_branch
      %2359 = sbr.rel (0) target = $region65
    $region64: #{tpu_custom_call.1} parent=1 // pred_region
      %2361 = vsyncadd [#allocation4], 0
      %s2363 = sshll.u32 [#allocation13], 4
      %s2364 = int_to_ptr.vmem [resolvable:$true] %s2363
      %s2365 = sshll.u32 %s9, 4
      %s2366 = int_to_ptr.hbm [resolvable:$true] %s2365
      %2368 = dma.vmem_to_hbm [thread:$0]  %s2364, 64, %s2366, [#allocation4]
    $region65: #{tpu_custom_call.1} parent=1 // pred_fallthru
      _
    // Predicated region
    $region66: #{tpu_custom_call.1} parent=1 // pred_check
      _
    $region67: #{tpu_custom_call.1} parent=1 // pred_check_branch
      %2370 = sbr.rel (0) target = $region69
    $region68: #{tpu_custom_call.1} parent=1 // pred_region
      %2372 = dma.done [#allocation4], 64
    $region69: #{tpu_custom_call.1} parent=1 // pred_fallthru
      _
    %2373 = vsyncpa [#allocation3], 1
    %2374 = vsyncpa [#allocation6], 1
    %2375 = vsyncpa [#allocation9], 1
    %2376 = vsyncpa [#allocation12], 1
    %2377 = vsyncpa [#allocation4], 1

</llo_original>
